<compile_context>
chip_gen: v7x
topology: tpu7x:2x2x1
jax: 0.10.0
libtpu: 0.0.40
codegen_flags: <defaults>
</compile_context>

<pallas_src>
import math
from functools import partial

import jax
import jax.numpy as jnp
from jax.experimental import pallas as pl
from jax.experimental.pallas import tpu as pltpu

BN_EPS = 1e-5  # PyTorch BatchNorm2d default


# ---------------------------------------------------------------------------
# Fused kernel: lazy-im2col conv(kxk) + bias + ReLU, then two 1x1 convs with
# bias + ReLU, all on a (TM, Cout) tile resident in VMEM/vregs; transposed
# (Cout, TM) store so the output is already NCHW-flat.
# ---------------------------------------------------------------------------
def _ninblock_kernel(x_ref, w1_ref, b1_ref, w2_ref, b2_ref, w3_ref, b3_ref,
                     o_ref, *, th, ow, cin, ksize):
    # x_ref : (Hp, Wp, Cin)   bf16  padded image of the current batch element
    # w1_ref: (k*k*Cin, Cout) bf16  conv1 weights (BN1 scale folded in)
    # w2/w3 : (Cout, Cout)    bf16  1x1 conv weights (BN scale folded in)
    # b*    : (1, Cout)       f32   folded conv-bias + BN shift
    # o_ref : (Cout, TM)            output tile (transposed), TM = th * ow
    i = pl.program_id(1)
    h0 = pl.multiple_of(i * th, th)      # first output row of this tile
    tm = th * ow
    kcin = ksize * cin
    cout = o_ref.shape[0]

    # One aligned slab covering every (kh, kw) tap of this row tile.
    slab = x_ref[pl.ds(h0, th + ksize - 1), :, :]          # (th+k-1, Wp, Cin)

    # ---- stage 1: k x k conv as `k` wide MXU dots (K = k*Cin) ---------------
    acc = jnp.zeros((tm, cout), jnp.float32)
    for kh in range(ksize):
        taps = [slab[kh:kh + th, kw:kw + ow, :] for kw in range(ksize)]
        patch = jnp.concatenate(taps, axis=-1)             # (th, ow, k*Cin) bf16
        patch = patch.reshape(tm, kcin)
        wsl = w1_ref[pl.ds(kh * kcin, kcin), :]            # (k*Cin, Cout)
        acc = acc + jnp.dot(patch, wsl, preferred_element_type=jnp.float32)
    h1 = jnp.maximum(acc + b1_ref[...], 0.0)               # f32 epilogue

    # ---- stage 2: 1x1 conv + BN(folded) + ReLU ------------------------------
    h2 = jnp.dot(h1.astype(jnp.bfloat16), w2_ref[...],
                 preferred_element_type=jnp.float32)
    h2 = jnp.maximum(h2 + b2_ref[...], 0.0)

    # ---- stage 3: 1x1 conv + BN(folded) + ReLU ------------------------------
    h3 = jnp.dot(h2.astype(jnp.bfloat16), w3_ref[...],
                 preferred_element_type=jnp.float32)
    h3 = jnp.maximum(h3 + b3_ref[...], 0.0)

    # In-kernel NHWC->NCHW: one XLU transpose, lane-dense (last dim = TM) store.
    o_ref[...] = jnp.transpose(h3).astype(o_ref.dtype)


def _pick_tile_rows(oh, ow, target_m=2048):
    """Largest divisor of oh whose row tile keeps TM = th*ow <= target_m
    (prefers th == oh, i.e. one grid step per image, when it fits)."""
    th = max(1, min(oh, target_m // max(1, ow)))
    while oh % th:
        th -= 1
    return th


# ---------------------------------------------------------------------------
# Wrapper: NCHW in, NCHW out; NHWC internally, transposed store in-kernel.
# ---------------------------------------------------------------------------
@partial(jax.jit,
         static_argnames=("kernel_size", "padding", "tile_rows", "out_dtype"))
def ninblock_forward(x_nchw, params, *, kernel_size=3, padding=1,
                     tile_rows=None, out_dtype=jnp.float32):
    w1, b1, w2, b2, w3, b3 = params       # bf16 weights (BN-folded), f32 biases
    n, cin, h, wdt = x_nchw.shape
    cout = w2.shape[1]
    k, p = kernel_size, padding

    oh = h + 2 * p - k + 1
    ow = wdt + 2 * p - k + 1
    hp, wp = h + 2 * p, wdt + 2 * p
    assert oh >= 1 and ow >= 1

    th = tile_rows if tile_rows is not None else _pick_tile_rows(oh, ow)
    assert oh % th == 0, f"row tile {th} must divide output height {oh}"
    tm = th * ow
    assert th == oh or tm % 128 == 0, (
        "partial row tiles need TM to be a multiple of 128 for lane-dense stores")
    grid = (n, oh // th)

    # NCHW -> NHWC once, cast to bf16, zero-pad the halo (one input fusion).
    x = jnp.transpose(x_nchw, (0, 2, 3, 1)).astype(jnp.bfloat16)
    xp = jnp.pad(x, ((0, 0), (p, p), (p, p), (0, 0)))

    out_flat = pl.pallas_call(
        partial(_ninblock_kernel, th=th, ow=ow, cin=cin, ksize=k),
        out_shape=jax.ShapeDtypeStruct((n, cout, oh * ow), out_dtype),
        grid_spec=pltpu.PrefetchScalarGridSpec(
            num_scalar_prefetch=0,
            grid=grid,
            in_specs=[
                # padded image: resident per batch element (index only on b)
                pl.BlockSpec((None, hp, wp, cin), lambda b, i: (b, 0, 0, 0)),
                # weights / biases: fetched once (constant block index)
                pl.BlockSpec((k * k * cin, cout), lambda b, i: (0, 0)),
                pl.BlockSpec((1, cout), lambda b, i: (0, 0)),
                pl.BlockSpec((cout, cout), lambda b, i: (0, 0)),
                pl.BlockSpec((1, cout), lambda b, i: (0, 0)),
                pl.BlockSpec((cout, cout), lambda b, i: (0, 0)),
                pl.BlockSpec((1, cout), lambda b, i: (0, 0)),
            ],
            out_specs=pl.BlockSpec((None, cout, tm), lambda b, i: (b, 0, i)),
        ),
        compiler_params=pltpu.CompilerParams(
            dimension_semantics=("parallel", "parallel")),
    )(xp, w1, b1, w2, b2, w3, b3)

    # Already channel-major: only a free reshape, no output transpose pass.
    return out_flat.reshape(n, cout, oh, ow)


# ---------------------------------------------------------------------------
# Deterministic synthetic parameters with inference-mode BN folding.
# Weights are stored bf16 (MXU operands); folded biases stay f32.
# ---------------------------------------------------------------------------
def init_params(key, cin, cout, kernel_size=3):
    def conv_bn(k, c_in, c_out, ksz):
        ks = jax.random.split(k, 6)
        fan_in = c_in * ksz * ksz
        w = jax.random.normal(ks[0], (c_out, c_in, ksz, ksz),
                              jnp.float32) / math.sqrt(fan_in)
        conv_b = 0.01 * jax.random.normal(ks[1], (c_out,), jnp.float32)
        gamma = 1.0 + 0.1 * jax.random.normal(ks[2], (c_out,), jnp.float32)
        beta = 0.1 * jax.random.normal(ks[3], (c_out,), jnp.float32)
        mean = 0.1 * jax.random.normal(ks[4], (c_out,), jnp.float32)
        var = 1.0 + 0.1 * jax.random.uniform(ks[5], (c_out,), jnp.float32)
        scale = gamma / jnp.sqrt(var + BN_EPS)
        # PyTorch conv weight (Cout,Cin,kh,kw); patch columns ordered [kh,kw,ci]
        w_mat = jnp.transpose(w, (2, 3, 1, 0)).reshape(ksz * ksz * c_in, c_out)
        w_mat = (w_mat * scale).astype(jnp.bfloat16)   # fold BN scale, bf16 cast
        bias = ((conv_b - mean) * scale + beta).reshape(1, c_out)
        return w_mat, bias

    k1, k2, k3 = jax.random.split(key, 3)
    w1, b1 = conv_bn(k1, cin, cout, kernel_size)
    w2, b2 = conv_bn(k2, cout, cout, 1)
    w3, b3 = conv_bn(k3, cout, cout, 1)
    return (w1, b1, w2, b2, w3, b3)


# ---------------------------------------------------------------------------
# Pure-JAX f32 reference (same folded params) for correctness checking.
# ---------------------------------------------------------------------------
def ninblock_reference(x_nchw, params, kernel_size=3, padding=1):
    w1, b1, w2, b2, w3, b3 = params
    w1, w2, w3 = (w.astype(jnp.float32) for w in (w1, w2, w3))
    k, p = kernel_size, padding
    x = jnp.transpose(x_nchw, (0, 2, 3, 1)).astype(jnp.float32)
    n, h, wdt, cin = x.shape
    oh, ow = h + 2 * p - k + 1, wdt + 2 * p - k + 1
    cout = b1.shape[-1]
    xp = jnp.pad(x, ((0, 0), (p, p), (p, p), (0, 0)))
    acc = jnp.zeros((n, oh, ow, cout), jnp.float32)
    for kh in range(k):
        for kw in range(k):
            tap = xp[:, kh:kh + oh, kw:kw + ow, :]
            wsl = w1[(kh * k + kw) * cin:(kh * k + kw + 1) * cin, :]
            acc = acc + jnp.einsum('nhwc,cd->nhwd', tap, wsl)
    h1 = jnp.maximum(acc + b1.reshape(1, 1, 1, -1), 0.0)
    h2 = jnp.maximum(jnp.einsum('nhwc,cd->nhwd', h1, w2)
                     + b2.reshape(1, 1, 1, -1), 0.0)
    h3 = jnp.maximum(jnp.einsum('nhwc,cd->nhwd', h2, w3)
                     + b3.reshape(1, 1, 1, -1), 0.0)
    return jnp.transpose(h3, (0, 3, 1, 2))


if __name__ == "__main__":
    key = jax.random.PRNGKey(0)
    N, CIN, COUT, H, W = 2, 64, 128, 16, 16

    params = init_params(jax.random.fold_in(key, 1), CIN, COUT, kernel_size=3)
    x = jax.random.normal(jax.random.fold_in(key, 2), (N, CIN, H, W),
                          jnp.float32)

    # default tiling: th = OH = 16 -> TM = 256 per step, grid = (2, 1)
    out = ninblock_forward(x, params, kernel_size=3, padding=1)
    out = jax.block_until_ready(out)

    assert out.shape == (N, COUT, H, W), out.shape
    assert bool(jnp.all(out >= 0.0))            # ReLU epilogue applied

    ref = ninblock_reference(x, params, kernel_size=3, padding=1)
    max_err = float(jnp.max(jnp.abs(out - ref)))
    assert max_err < 0.25, f"max abs error {max_err} too large (bf16 tol)"

    print("KERNEL_OK")
</pallas_src>

<mosaic_0001>
module attributes {stable_mosaic.version = 11 : i64} {
  func.func @_ninblock_kernel(%arg0: i32, %arg1: i32, %arg2: memref<1x18x18x64xbf16, #tpu.memory_space<vmem>>, %arg3: memref<576x128xbf16, #tpu.memory_space<vmem>>, %arg4: memref<1x128xf32, #tpu.memory_space<vmem>>, %arg5: memref<128x128xbf16, #tpu.memory_space<vmem>>, %arg6: memref<1x128xf32, #tpu.memory_space<vmem>>, %arg7: memref<128x128xbf16, #tpu.memory_space<vmem>>, %arg8: memref<1x128xf32, #tpu.memory_space<vmem>>, %arg9: memref<1x128x256xf32, #tpu.memory_space<vmem>>) attributes {dimension_semantics = [#tpu.dimension_semantics<parallel>, #tpu.dimension_semantics<parallel>], iteration_bounds = array<i64: 2, 1>, scalar_prefetch = 0 : i64, scratch_operands = 0 : i64, tpu.core_type = #tpu.core_type<tc>, window_params = [{transform_indices = @transform_0, window_bounds = array<i64: 1, 18, 18, 64>}, {pipeline_mode = #tpu.pipeline_mode<synchronous>, transform_indices = @transform_1, window_bounds = array<i64: 576, 128>}, {pipeline_mode = #tpu.pipeline_mode<synchronous>, transform_indices = @transform_2, window_bounds = array<i64: 1, 128>}, {pipeline_mode = #tpu.pipeline_mode<synchronous>, transform_indices = @transform_3, window_bounds = array<i64: 128, 128>}, {pipeline_mode = #tpu.pipeline_mode<synchronous>, transform_indices = @transform_4, window_bounds = array<i64: 1, 128>}, {pipeline_mode = #tpu.pipeline_mode<synchronous>, transform_indices = @transform_5, window_bounds = array<i64: 128, 128>}, {pipeline_mode = #tpu.pipeline_mode<synchronous>, transform_indices = @transform_6, window_bounds = array<i64: 1, 128>}, {transform_indices = @transform_7, window_bounds = array<i64: 1, 128, 256>}]} {
    %c16_i32 = arith.constant 16 : i32
    %0 = arith.muli %arg1, %c16_i32 : i32
    %1 = tpu.assume_multiple %0, 16 : i32
    %c0 = arith.constant 0 : index
    %2 = arith.index_cast %1 : i32 to index
    %c0_0 = arith.constant 0 : index
    %c0_1 = arith.constant 0 : index
    %3 = vector.load %arg2[%c0, %2, %c0_0, %c0_1] : memref<1x18x18x64xbf16, #tpu.memory_space<vmem>>, vector<1x18x18x64xbf16>
    %4 = vector.shape_cast %3 : vector<1x18x18x64xbf16> to vector<18x18x64xbf16>
    %cst = arith.constant 0.000000e+00 : f32
    %5 = vector.broadcast %cst : f32 to vector<256x128xf32>
    %6 = vector.extract_strided_slice %4 {offsets = [0, 0, 0], sizes = [16, 16, 64], strides = [1, 1, 1]} : vector<18x18x64xbf16> to vector<16x16x64xbf16>
    %7 = vector.extract_strided_slice %4 {offsets = [0, 1, 0], sizes = [16, 16, 64], strides = [1, 1, 1]} : vector<18x18x64xbf16> to vector<16x16x64xbf16>
    %8 = vector.extract_strided_slice %4 {offsets = [0, 2, 0], sizes = [16, 16, 64], strides = [1, 1, 1]} : vector<18x18x64xbf16> to vector<16x16x64xbf16>
    %9 = tpu.concatenate %6, %7, %8 in 2 : vector<16x16x64xbf16>, vector<16x16x64xbf16>, vector<16x16x64xbf16> -> vector<16x16x192xbf16>
    %10 = vector.shape_cast %9 : vector<16x16x192xbf16> to vector<256x192xbf16>
    %c0_2 = arith.constant 0 : index
    %c0_3 = arith.constant 0 : index
    %11 = vector.load %arg3[%c0_2, %c0_3] : memref<576x128xbf16, #tpu.memory_space<vmem>>, vector<192x128xbf16>
    %cst_4 = arith.constant dense<0.000000e+00> : vector<256x128xf32>
    %12 = tpu.matmul %10, %11, %cst_4 {dimension_numbers = #tpu.dot_dimension_numbers<[1], [0], [0], [1], [0, 0, 1, 1], [], []>} : vector<256x192xbf16>, vector<192x128xbf16>, vector<256x128xf32> -> vector<256x128xf32>
    %13 = arith.addf %5, %12 : vector<256x128xf32>
    %14 = vector.extract_strided_slice %4 {offsets = [1, 0, 0], sizes = [16, 16, 64], strides = [1, 1, 1]} : vector<18x18x64xbf16> to vector<16x16x64xbf16>
    %15 = vector.extract_strided_slice %4 {offsets = [1, 1, 0], sizes = [16, 16, 64], strides = [1, 1, 1]} : vector<18x18x64xbf16> to vector<16x16x64xbf16>
    %16 = vector.extract_strided_slice %4 {offsets = [1, 2, 0], sizes = [16, 16, 64], strides = [1, 1, 1]} : vector<18x18x64xbf16> to vector<16x16x64xbf16>
    %17 = tpu.concatenate %14, %15, %16 in 2 : vector<16x16x64xbf16>, vector<16x16x64xbf16>, vector<16x16x64xbf16> -> vector<16x16x192xbf16>
    %18 = vector.shape_cast %17 : vector<16x16x192xbf16> to vector<256x192xbf16>
    %c192 = arith.constant 192 : index
    %c0_5 = arith.constant 0 : index
    %19 = vector.load %arg3[%c192, %c0_5] : memref<576x128xbf16, #tpu.memory_space<vmem>>, vector<192x128xbf16>
    %cst_6 = arith.constant dense<0.000000e+00> : vector<256x128xf32>
    %20 = tpu.matmul %18, %19, %cst_6 {dimension_numbers = #tpu.dot_dimension_numbers<[1], [0], [0], [1], [0, 0, 1, 1], [], []>} : vector<256x192xbf16>, vector<192x128xbf16>, vector<256x128xf32> -> vector<256x128xf32>
    %21 = arith.addf %13, %20 : vector<256x128xf32>
    %22 = vector.extract_strided_slice %4 {offsets = [2, 0, 0], sizes = [16, 16, 64], strides = [1, 1, 1]} : vector<18x18x64xbf16> to vector<16x16x64xbf16>
    %23 = vector.extract_strided_slice %4 {offsets = [2, 1, 0], sizes = [16, 16, 64], strides = [1, 1, 1]} : vector<18x18x64xbf16> to vector<16x16x64xbf16>
    %24 = vector.extract_strided_slice %4 {offsets = [2, 2, 0], sizes = [16, 16, 64], strides = [1, 1, 1]} : vector<18x18x64xbf16> to vector<16x16x64xbf16>
    %25 = tpu.concatenate %22, %23, %24 in 2 : vector<16x16x64xbf16>, vector<16x16x64xbf16>, vector<16x16x64xbf16> -> vector<16x16x192xbf16>
    %26 = vector.shape_cast %25 : vector<16x16x192xbf16> to vector<256x192xbf16>
    %c384 = arith.constant 384 : index
    %c0_7 = arith.constant 0 : index
    %27 = vector.load %arg3[%c384, %c0_7] : memref<576x128xbf16, #tpu.memory_space<vmem>>, vector<192x128xbf16>
    %cst_8 = arith.constant dense<0.000000e+00> : vector<256x128xf32>
    %28 = tpu.matmul %26, %27, %cst_8 {dimension_numbers = #tpu.dot_dimension_numbers<[1], [0], [0], [1], [0, 0, 1, 1], [], []>} : vector<256x192xbf16>, vector<192x128xbf16>, vector<256x128xf32> -> vector<256x128xf32>
    %29 = arith.addf %21, %28 : vector<256x128xf32>
    %c0_9 = arith.constant 0 : index
    %c0_10 = arith.constant 0 : index
    %30 = vector.load %arg4[%c0_9, %c0_10] : memref<1x128xf32, #tpu.memory_space<vmem>>, vector<1x128xf32>
    %31 = vector.broadcast %30 : vector<1x128xf32> to vector<256x128xf32>
    %32 = arith.addf %29, %31 : vector<256x128xf32>
    %cst_11 = arith.constant 0.000000e+00 : f32
    %33 = vector.broadcast %cst_11 : f32 to vector<256x128xf32>
    %34 = arith.maximumf %32, %33 : vector<256x128xf32>
    %35 = arith.truncf %34 : vector<256x128xf32> to vector<256x128xbf16>
    %c0_12 = arith.constant 0 : index
    %c0_13 = arith.constant 0 : index
    %36 = vector.load %arg5[%c0_12, %c0_13] : memref<128x128xbf16, #tpu.memory_space<vmem>>, vector<128x128xbf16>
    %cst_14 = arith.constant dense<0.000000e+00> : vector<256x128xf32>
    %37 = tpu.matmul %35, %36, %cst_14 {dimension_numbers = #tpu.dot_dimension_numbers<[1], [0], [0], [1], [0, 0, 1, 1], [], []>} : vector<256x128xbf16>, vector<128x128xbf16>, vector<256x128xf32> -> vector<256x128xf32>
    %c0_15 = arith.constant 0 : index
    %c0_16 = arith.constant 0 : index
    %38 = vector.load %arg6[%c0_15, %c0_16] : memref<1x128xf32, #tpu.memory_space<vmem>>, vector<1x128xf32>
    %39 = vector.broadcast %38 : vector<1x128xf32> to vector<256x128xf32>
    %40 = arith.addf %37, %39 : vector<256x128xf32>
    %cst_17 = arith.constant 0.000000e+00 : f32
    %41 = vector.broadcast %cst_17 : f32 to vector<256x128xf32>
    %42 = arith.maximumf %40, %41 : vector<256x128xf32>
    %43 = arith.truncf %42 : vector<256x128xf32> to vector<256x128xbf16>
    %c0_18 = arith.constant 0 : index
    %c0_19 = arith.constant 0 : index
    %44 = vector.load %arg7[%c0_18, %c0_19] : memref<128x128xbf16, #tpu.memory_space<vmem>>, vector<128x128xbf16>
    %cst_20 = arith.constant dense<0.000000e+00> : vector<256x128xf32>
    %45 = tpu.matmul %43, %44, %cst_20 {dimension_numbers = #tpu.dot_dimension_numbers<[1], [0], [0], [1], [0, 0, 1, 1], [], []>} : vector<256x128xbf16>, vector<128x128xbf16>, vector<256x128xf32> -> vector<256x128xf32>
    %c0_21 = arith.constant 0 : index
    %c0_22 = arith.constant 0 : index
    %46 = vector.load %arg8[%c0_21, %c0_22] : memref<1x128xf32, #tpu.memory_space<vmem>>, vector<1x128xf32>
    %47 = vector.broadcast %46 : vector<1x128xf32> to vector<256x128xf32>
    %48 = arith.addf %45, %47 : vector<256x128xf32>
    %cst_23 = arith.constant 0.000000e+00 : f32
    %49 = vector.broadcast %cst_23 : f32 to vector<256x128xf32>
    %50 = arith.maximumf %48, %49 : vector<256x128xf32>
    %51 = tpu.transpose %50, [1, 0] : vector<256x128xf32> -> vector<128x256xf32>
    %c0_24 = arith.constant 0 : index
    %c0_25 = arith.constant 0 : index
    %c0_26 = arith.constant 0 : index
    %52 = vector.load %arg9[%c0_24, %c0_25, %c0_26] : memref<1x128x256xf32, #tpu.memory_space<vmem>>, vector<1x128x256xf32>
    %53 = vector.shape_cast %52 : vector<1x128x256xf32> to vector<128x256xf32>
    %54 = vector.shape_cast %51 : vector<128x256xf32> to vector<1x128x256xf32>
    tpu.vector_store %arg9[%c0_24, %c0_25, %c0_26], %54 {strides = array<i32>} : memref<1x128x256xf32, #tpu.memory_space<vmem>>, vector<1x128x256xf32>,
    return
  }
  func.func @transform_0(%arg0: i32, %arg1: i32) -> (i32, i32, i32, i32) {
    %c0_i32 = arith.constant 0 : i32
    %c0_i32_0 = arith.constant 0 : i32
    %c0_i32_1 = arith.constant 0 : i32
    %c0_i32_2 = arith.constant 0 : i32
    return %arg0, %c0_i32, %c0_i32_0, %c0_i32_1 : i32, i32, i32, i32
  }
  func.func @transform_1(%arg0: i32, %arg1: i32) -> (i32, i32) {
    %c0_i32 = arith.constant 0 : i32
    %c0_i32_0 = arith.constant 0 : i32
    %c0_i32_1 = arith.constant 0 : i32
    return %c0_i32, %c0_i32_0 : i32, i32
  }
  func.func @transform_2(%arg0: i32, %arg1: i32) -> (i32, i32) {
    %c0_i32 = arith.constant 0 : i32
    %c0_i32_0 = arith.constant 0 : i32
    %c0_i32_1 = arith.constant 0 : i32
    return %c0_i32, %c0_i32_0 : i32, i32
  }
  func.func @transform_3(%arg0: i32, %arg1: i32) -> (i32, i32) {
    %c0_i32 = arith.constant 0 : i32
    %c0_i32_0 = arith.constant 0 : i32
    %c0_i32_1 = arith.constant 0 : i32
    return %c0_i32, %c0_i32_0 : i32, i32
  }
  func.func @transform_4(%arg0: i32, %arg1: i32) -> (i32, i32) {
    %c0_i32 = arith.constant 0 : i32
    %c0_i32_0 = arith.constant 0 : i32
    %c0_i32_1 = arith.constant 0 : i32
    return %c0_i32, %c0_i32_0 : i32, i32
  }
  func.func @transform_5(%arg0: i32, %arg1: i32) -> (i32, i32) {
    %c0_i32 = arith.constant 0 : i32
    %c0_i32_0 = arith.constant 0 : i32
    %c0_i32_1 = arith.constant 0 : i32
    return %c0_i32, %c0_i32_0 : i32, i32
  }
  func.func @transform_6(%arg0: i32, %arg1: i32) -> (i32, i32) {
    %c0_i32 = arith.constant 0 : i32
    %c0_i32_0 = arith.constant 0 : i32
    %c0_i32_1 = arith.constant 0 : i32
    return %c0_i32, %c0_i32_0 : i32, i32
  }
  func.func @transform_7(%arg0: i32, %arg1: i32) -> (i32, i32, i32) {
    %c0_i32 = arith.constant 0 : i32
    %c0_i32_0 = arith.constant 0 : i32
    return %arg0, %c0_i32, %arg1 : i32, i32, i32
  }
}

</mosaic_0001>

<llo_original>
// kernel: ninblock_forward.1
$region0: #{ninblock_forward.1}
  #allocation0 [shape = 'u32[]', space=smem, size = 0x4, offset = 0x4, fixed_abs, tag = 'smem constant byte address 0x4 - core index']
  #allocation1 [shape = 'u32[144,128]{1,0:T(1,128)}', space=vmem, size = 0x12000, scoped, tag = 'internal scratch']
  %s0 = inlined_call_operand.vmem [shape: bf16[2,18,18,64], index: 0, kind: input, shape index: {}]
  %s1 = inlined_call_operand.vmem [shape: bf16[576,128], index: 1, kind: input, shape index: {}]
  %s2 = inlined_call_operand.vmem [shape: f32[1,128], index: 2, kind: input, shape index: {}]
  %s3 = inlined_call_operand.vmem [shape: bf16[128,128], index: 3, kind: input, shape index: {}]
  %s4 = inlined_call_operand.vmem [shape: f32[1,128], index: 4, kind: input, shape index: {}]
  %s5 = inlined_call_operand.vmem [shape: bf16[128,128], index: 5, kind: input, shape index: {}]
  %s6 = inlined_call_operand.vmem [shape: f32[1,128], index: 6, kind: input, shape index: {}]
  %s7 = inlined_call_operand.vmem [shape: f32[2,128,256], index: 7, kind: output, shape index: {}]
  %s8 = sld [smem:[#allocation0]]
  $region61: #{ninblock_forward.1} parent=0
    _
  %s10 = ssub.s32 1, %s8
  %s11 = scalar_select 0, %s10, %s8
  loop: start=0, step=1, limit=4
  $region2: #{ninblock_forward.1} parent=0 // loop_pre_header
    _
  $region3: #{ninblock_forward.1} parent=0 // loop_header
    %s13 = sphi 0, %s17
    %p14 = scmp.ge.s32.totalorder %s13, 4
    %s20 = sphi 0, %s32
    %s21 = sphi 0, %s28
    %s22 = sphi 0, %s20
    %s23 = sphi 0, %s21
    %s24 = sphi 0, %s22
    %s25 = sphi 0, %s23
    %s35 = sphi 0, %s37
    %s38 = sphi 0, %s35
    %s39 = sphi 0, %s38
    %s55 = sphi 0, %s39
    %s59 = sphi 0, %s59
    %s61 = sphi 0, %s59
    %s62 = sphi 0, %s61
    %s76 = sphi 0, %s62
    %s80 = sphi 0, %s80
    %s82 = sphi 0, %s80
    %s83 = sphi 0, %s82
    %s97 = sphi 0, %s83
    %s101 = sphi 0, %s101
    %s103 = sphi 0, %s101
    %s104 = sphi 0, %s103
    %s118 = sphi 0, %s104
    %s122 = sphi 0, %s122
    %s124 = sphi 0, %s122
    %s125 = sphi 0, %s124
    %s139 = sphi 0, %s125
    %s143 = sphi 0, %s143
    %s145 = sphi 0, %s143
    %s146 = sphi 0, %s145
    %s160 = sphi 0, %s146
    %s164 = sphi 0, %s164
    %s166 = sphi 0, %s164
    %s167 = sphi 0, %s166
    %s181 = sphi 0, %s167
    %s189 = sphi 0, %s191
    %s192 = sphi 0, %s189
    %s193 = sphi 0, %s192
    %s209 = sphi 0, %s193
  $region4: #{ninblock_forward.1} parent=0 // loop_header_branch
    %16 = sbr.rel (%p14) target = $region8
  $region5: #{ninblock_forward.1} parent=0 // loop_body
    %s18 = ssub.s32 %s13, 1
    %s19 = ssub.s32 %s13, 2
    %s26 = sadd.s32 1, %s21
    %p27 = scmp.ge.s32.totalorder %s26, 1
    %s28 = scalar_select %p27, 0, %s26
    %s29 = sadd.s32 1, %s20
    %s30 = scalar_select %p27, %s29, %s20
    %p31 = scmp.ge.s32.totalorder %s30, 2
    %s32 = scalar_select %p31, 0, %s30
    %s33 = ssub.s32 %s20, %s32
    %p34 = scmp.eq.s32.totalorder %s33, 0
    %s36 = sadd.s32 %s35, 1
    %s37 = scalar_select %p34, %s35, %s36
    %p40 = pneg %p34
    %p41 = scmp.eq.s32.totalorder %s13, 1
    %p42 = por %p40, %p41
    %p43 = scmp.ne.s32.totalorder %s35, %s38
    %p44 = scmp.eq.s32.totalorder %s13, 0
    %p45 = por %p43, %p44
    %p46 = scmp.ne.s32.totalorder %s35, %s38
    %p47 = scmp.eq.s32.totalorder %s18, 1
    %p48 = por %p46, %p47
    %p49 = scmp.ne.s32.totalorder %s38, %s39
    %p50 = scmp.eq.s32.totalorder %s18, 0
    %p51 = por %p49, %p50
    %p52 = scmp.ne.s32.totalorder %s38, %s39
    %p53 = scmp.eq.s32.totalorder %s19, 1
    %p54 = por %p52, %p53
    %p56 = scmp.ne.s32.totalorder %s39, %s55
    %p57 = scmp.eq.s32.totalorder %s19, 0
    %p58 = por %p56, %p57
    %s60 = sadd.s32 %s59, 1
    %p63 = scmp.eq.s32.totalorder %s13, 1
    %p64 = scmp.ne.s32.totalorder %s59, %s61
    %p65 = scmp.eq.s32.totalorder %s13, 0
    %p66 = por %p64, %p65
    %p67 = scmp.ne.s32.totalorder %s59, %s61
    %p68 = scmp.eq.s32.totalorder %s18, 1
    %p69 = por %p67, %p68
    %p70 = scmp.ne.s32.totalorder %s61, %s62
    %p71 = scmp.eq.s32.totalorder %s18, 0
    %p72 = por %p70, %p71
    %p73 = scmp.ne.s32.totalorder %s61, %s62
    %p74 = scmp.eq.s32.totalorder %s19, 1
    %p75 = por %p73, %p74
    %p77 = scmp.ne.s32.totalorder %s62, %s76
    %p78 = scmp.eq.s32.totalorder %s19, 0
    %p79 = por %p77, %p78
    %s81 = sadd.s32 %s80, 1
    %p84 = scmp.eq.s32.totalorder %s13, 1
    %p85 = scmp.ne.s32.totalorder %s80, %s82
    %p86 = scmp.eq.s32.totalorder %s13, 0
    %p87 = por %p85, %p86
    %p88 = scmp.ne.s32.totalorder %s80, %s82
    %p89 = scmp.eq.s32.totalorder %s18, 1
    %p90 = por %p88, %p89
    %p91 = scmp.ne.s32.totalorder %s82, %s83
    %p92 = scmp.eq.s32.totalorder %s18, 0
    %p93 = por %p91, %p92
    %p94 = scmp.ne.s32.totalorder %s82, %s83
    %p95 = scmp.eq.s32.totalorder %s19, 1
    %p96 = por %p94, %p95
    %p98 = scmp.ne.s32.totalorder %s83, %s97
    %p99 = scmp.eq.s32.totalorder %s19, 0
    %p100 = por %p98, %p99
    %s102 = sadd.s32 %s101, 1
    %p105 = scmp.eq.s32.totalorder %s13, 1
    %p106 = scmp.ne.s32.totalorder %s101, %s103
    %p107 = scmp.eq.s32.totalorder %s13, 0
    %p108 = por %p106, %p107
    %p109 = scmp.ne.s32.totalorder %s101, %s103
    %p110 = scmp.eq.s32.totalorder %s18, 1
    %p111 = por %p109, %p110
    %p112 = scmp.ne.s32.totalorder %s103, %s104
    %p113 = scmp.eq.s32.totalorder %s18, 0
    %p114 = por %p112, %p113
    %p115 = scmp.ne.s32.totalorder %s103, %s104
    %p116 = scmp.eq.s32.totalorder %s19, 1
    %p117 = por %p115, %p116
    %p119 = scmp.ne.s32.totalorder %s104, %s118
    %p120 = scmp.eq.s32.totalorder %s19, 0
    %p121 = por %p119, %p120
    %s123 = sadd.s32 %s122, 1
    %p126 = scmp.eq.s32.totalorder %s13, 1
    %p127 = scmp.ne.s32.totalorder %s122, %s124
    %p128 = scmp.eq.s32.totalorder %s13, 0
    %p129 = por %p127, %p128
    %p130 = scmp.ne.s32.totalorder %s122, %s124
    %p131 = scmp.eq.s32.totalorder %s18, 1
    %p132 = por %p130, %p131
    %p133 = scmp.ne.s32.totalorder %s124, %s125
    %p134 = scmp.eq.s32.totalorder %s18, 0
    %p135 = por %p133, %p134
    %p136 = scmp.ne.s32.totalorder %s124, %s125
    %p137 = scmp.eq.s32.totalorder %s19, 1
    %p138 = por %p136, %p137
    %p140 = scmp.ne.s32.totalorder %s125, %s139
    %p141 = scmp.eq.s32.totalorder %s19, 0
    %p142 = por %p140, %p141
    %s144 = sadd.s32 %s143, 1
    %p147 = scmp.eq.s32.totalorder %s13, 1
    %p148 = scmp.ne.s32.totalorder %s143, %s145
    %p149 = scmp.eq.s32.totalorder %s13, 0
    %p150 = por %p148, %p149
    %p151 = scmp.ne.s32.totalorder %s143, %s145
    %p152 = scmp.eq.s32.totalorder %s18, 1
    %p153 = por %p151, %p152
    %p154 = scmp.ne.s32.totalorder %s145, %s146
    %p155 = scmp.eq.s32.totalorder %s18, 0
    %p156 = por %p154, %p155
    %p157 = scmp.ne.s32.totalorder %s145, %s146
    %p158 = scmp.eq.s32.totalorder %s19, 1
    %p159 = por %p157, %p158
    %p161 = scmp.ne.s32.totalorder %s146, %s160
    %p162 = scmp.eq.s32.totalorder %s19, 0
    %p163 = por %p161, %p162
    %s165 = sadd.s32 %s164, 1
    %p168 = scmp.eq.s32.totalorder %s13, 1
    %p169 = scmp.ne.s32.totalorder %s164, %s166
    %p170 = scmp.eq.s32.totalorder %s13, 0
    %p171 = por %p169, %p170
    %p172 = scmp.ne.s32.totalorder %s164, %s166
    %p173 = scmp.eq.s32.totalorder %s18, 1
    %p174 = por %p172, %p173
    %p175 = scmp.ne.s32.totalorder %s166, %s167
    %p176 = scmp.eq.s32.totalorder %s18, 0
    %p177 = por %p175, %p176
    %p178 = scmp.ne.s32.totalorder %s166, %s167
    %p179 = scmp.eq.s32.totalorder %s19, 1
    %p180 = por %p178, %p179
    %p182 = scmp.ne.s32.totalorder %s167, %s181
    %p183 = scmp.eq.s32.totalorder %s19, 0
    %p184 = por %p182, %p183
    %s185 = ssub.s32 %s20, %s32
    %s186 = ssub.s32 %s21, %s28
    %s187 = sor.u32 %s185, %s186
    %p188 = scmp.eq.s32.totalorder %s187, 0
    %s190 = sadd.s32 %s189, 1
    %s191 = scalar_select %p188, %s189, %s190
    %p194 = pneg %p188
    %p195 = scmp.eq.s32.totalorder %s13, 1
    %p196 = por %p194, %p195
    %p197 = scmp.ne.s32.totalorder %s189, %s192
    %p198 = scmp.eq.s32.totalorder %s13, 0
    %p199 = por %p197, %p198
    %p200 = scmp.ne.s32.totalorder %s189, %s192
    %p201 = scmp.eq.s32.totalorder %s18, 1
    %p202 = por %p200, %p201
    %p203 = scmp.ne.s32.totalorder %s192, %s193
    %p204 = scmp.eq.s32.totalorder %s18, 0
    %p205 = por %p203, %p204
    %p206 = scmp.ne.s32.totalorder %s192, %s193
    %p207 = scmp.eq.s32.totalorder %s19, 1
    %p208 = por %p206, %p207
    %p210 = scmp.ne.s32.totalorder %s193, %s209
    %p211 = scmp.eq.s32.totalorder %s19, 0
    %p212 = por %p210, %p211
    %p213 = scmp.le.s32.totalorder 1, %s13
    %p214 = scmp.lt.s32.totalorder %s13, 3
    %p215 = pnand %p213, %p214
    %p216 = pneg %p215
    // Predicated region
    $region9: #{ninblock_forward.1} parent=5 // pred_check
      _
    $region10: #{ninblock_forward.1} parent=5 // pred_check_branch
      %218 = sbr.rel (%p215) target = $region12
    $region11: #{ninblock_forward.1} parent=5 // pred_region
      %s219 = ssub.s32 %s13, 1
      // Predicated region
      $region13: #{ninblock_forward.1} parent=11 // pred_check
        %p220 = pneg %p72
      $region14: #{ninblock_forward.1} parent=11 // pred_check_branch
        %222 = sbr.rel (%p220) target = $region16
      $region15: #{ninblock_forward.1} parent=11 // pred_region
        _
      $region16: #{ninblock_forward.1} parent=11 // pred_fallthru
        _
      // Predicated region
      $region17: #{ninblock_forward.1} parent=11 // pred_check
        %p223 = pneg %p93
      $region18: #{ninblock_forward.1} parent=11 // pred_check_branch
        %225 = sbr.rel (%p223) target = $region20
      $region19: #{ninblock_forward.1} parent=11 // pred_region
        _
      $region20: #{ninblock_forward.1} parent=11 // pred_fallthru
        _
      // Predicated region
      $region21: #{ninblock_forward.1} parent=11 // pred_check
        %p226 = pneg %p114
      $region22: #{ninblock_forward.1} parent=11 // pred_check_branch
        %228 = sbr.rel (%p226) target = $region24
      $region23: #{ninblock_forward.1} parent=11 // pred_region
        _
      $region24: #{ninblock_forward.1} parent=11 // pred_fallthru
        _
      // Predicated region
      $region25: #{ninblock_forward.1} parent=11 // pred_check
        %p229 = pneg %p135
      $region26: #{ninblock_forward.1} parent=11 // pred_check_branch
        %231 = sbr.rel (%p229) target = $region28
      $region27: #{ninblock_forward.1} parent=11 // pred_region
        _
      $region28: #{ninblock_forward.1} parent=11 // pred_fallthru
        _
      // Predicated region
      $region29: #{ninblock_forward.1} parent=11 // pred_check
        %p232 = pneg %p156
      $region30: #{ninblock_forward.1} parent=11 // pred_check_branch
        %234 = sbr.rel (%p232) target = $region32
      $region31: #{ninblock_forward.1} parent=11 // pred_region
        _
      $region32: #{ninblock_forward.1} parent=11 // pred_fallthru
        _
      // Predicated region
      $region33: #{ninblock_forward.1} parent=11 // pred_check
        %p235 = pneg %p177
      $region34: #{ninblock_forward.1} parent=11 // pred_check_branch
        %237 = sbr.rel (%p235) target = $region36
      $region35: #{ninblock_forward.1} parent=11 // pred_region
        _
      $region36: #{ninblock_forward.1} parent=11 // pred_fallthru
        _
    $region12: #{ninblock_forward.1} parent=5 // pred_fallthru
      _
    %p238 = scmp.lt.s32.totalorder %s13, 2
    // Predicated region
    $region37: #{ninblock_forward.1} parent=5 // pred_check
      %p239 = pneg %p238
    $region38: #{ninblock_forward.1} parent=5 // pred_check_branch
      %241 = sbr.rel (%p239) target = $region40
    $region39: #{ninblock_forward.1} parent=5 // pred_region
      // Predicated region
      $region41: #{ninblock_forward.1} parent=39 // pred_check
        %p242 = pneg %p45
      $region42: #{ninblock_forward.1} parent=39 // pred_check_branch
        %244 = sbr.rel (%p242) target = $region44
      $region43: #{ninblock_forward.1} parent=39 // pred_region
        %p245 = scmp.lt.s32.totalorder %s20, 1
        %s246 = scalar_select %p245, %s20, 1
        %s247 = smul.addr %s246, 54
        %s248 = smul.addr %s247, 4
        %s249 = scalar_lea.vmem %s0, %s248
      $region44: #{ninblock_forward.1} parent=39 // pred_fallthru
        _
    $region40: #{ninblock_forward.1} parent=5 // pred_fallthru
      _
    %p250 = scmp.le.s32.totalorder 1, %s13
    %p251 = scmp.lt.s32.totalorder %s13, 3
    %p252 = pnand %p250, %p251
    %p253 = pneg %p252
    // Predicated region
    $region45: #{ninblock_forward.1} parent=5 // pred_check
      _
    $region46: #{ninblock_forward.1} parent=5 // pred_check_branch
      %255 = sbr.rel (%p252) target = $region48
    $region47: #{ninblock_forward.1} parent=5 // pred_region
      %s256 = ssub.s32 %s13, 1
      %p257 = scmp.lt.s32.totalorder %s22, 1
      %s258 = scalar_select %p257, %s22, 1
      %s259 = smul.addr %s258, 54
      %s260 = smul.addr %s259, 4
      %s261 = scalar_lea.vmem %s0, %s260
      %p262 = pneg %p51
      %p263 = pneg %p48
      %p264 = pneg %p72
      %p265 = pneg %p69
      %p266 = pneg %p93
      %p267 = pneg %p90
      %p268 = pneg %p114
      %p269 = pneg %p111
      %p270 = pneg %p135
      %p271 = pneg %p132
      %p272 = pneg %p156
      %p273 = pneg %p153
      %p274 = pneg %p177
      %p275 = pneg %p174
      %p276 = pneg %p205
      %p277 = pneg %p202
      %s278 = smul.u32 2, %s23
      %p279 = scmp.lt.s32.totalorder %s22, 1
      %s280 = scalar_select %p279, %s22, 1
      %p281 = scmp.lt.s32.totalorder %s278, 1
      %s282 = scalar_select %p281, %s278, 1
      %s283 = smul.addr %s280, 32
      %s284 = sadd.s32 %s282, %s283
      %s285 = smul.addr %s284, 8
      %s286 = scalar_lea.vmem %s7, %s285
      %p287 = scmp.lt.s32.totalorder %s22, 1
      %s288 = scalar_select %p287, %s22, 1
      %s289 = smul.addr %s288, 54
      %s290 = smul.addr %s289, 4
      %s291 = scalar_lea.vmem %s0, %s290
      %s292 = smul.u32 2, %s23
      %p293 = scmp.lt.s32.totalorder %s22, 1
      %s294 = scalar_select %p293, %s22, 1
      %p295 = scmp.lt.s32.totalorder %s292, 1
      %s296 = scalar_select %p295, %s292, 1
      %s297 = smul.addr %s294, 32
      %s298 = sadd.s32 %s296, %s297
      %s299 = smul.addr %s298, 8
      %s300 = scalar_lea.vmem %s7, %s299
      %s301 = smul.u32 2, %s23
      %s303 = smul.u32 %s23, 16
      %s304 = smul.u32 %s303, 3
      %s305 = smul.addr %s304, 4
      %s306 = scalar_lea.vmem %s291, %s305
      %v307 = vld [vmem:[%s306] sm:$0xf]
      %v308 = vld [vmem:[%s306 + $0x4] sm:$0xf]
      %v309 = vld [vmem:[%s306 + $0x8] sm:$0x1]
      %v310 = vld [vmem:[%s306 + $0xc] sm:$0xf]
      %v311 = vld [vmem:[%s306 + $0x10] sm:$0xf]
      %v312 = vld [vmem:[%s306 + $0x14] sm:$0x1]
      %v313 = vld [vmem:[%s306 + $0x18] sm:$0xf]
      %v314 = vld [vmem:[%s306 + $0x1c] sm:$0xf]
      %v315 = vld [vmem:[%s306 + $0x20] sm:$0x1]
      %v316 = vld [vmem:[%s306 + $0x24] sm:$0xf]
      %v317 = vld [vmem:[%s306 + $0x28] sm:$0xf]
      %v318 = vld [vmem:[%s306 + $0x2c] sm:$0x1]
      %v319 = vld [vmem:[%s306 + $0x30] sm:$0xf]
      %v320 = vld [vmem:[%s306 + $0x34] sm:$0xf]
      %v321 = vld [vmem:[%s306 + $0x38] sm:$0x1]
      %v322 = vld [vmem:[%s306 + $0x3c] sm:$0xf]
      %v323 = vld [vmem:[%s306 + $0x40] sm:$0xf]
      %v324 = vld [vmem:[%s306 + $0x44] sm:$0x1]
      %v325 = vld [vmem:[%s306 + $0x48] sm:$0xf]
      %v326 = vld [vmem:[%s306 + $0x4c] sm:$0xf]
      %v327 = vld [vmem:[%s306 + $0x50] sm:$0x1]
      %v328 = vld [vmem:[%s306 + $0x54] sm:$0xf]
      %v329 = vld [vmem:[%s306 + $0x58] sm:$0xf]
      %v330 = vld [vmem:[%s306 + $0x5c] sm:$0x1]
      %v331 = vld [vmem:[%s306 + $0x60] sm:$0xf]
      %v332 = vld [vmem:[%s306 + $0x64] sm:$0xf]
      %v333 = vld [vmem:[%s306 + $0x68] sm:$0x1]
      %v334 = vld [vmem:[%s306 + $0x6c] sm:$0xf]
      %v335 = vld [vmem:[%s306 + $0x70] sm:$0xf]
      %v336 = vld [vmem:[%s306 + $0x74] sm:$0x1]
      %v337 = vld [vmem:[%s306 + $0x78] sm:$0xf]
      %v338 = vld [vmem:[%s306 + $0x7c] sm:$0xf]
      %v339 = vld [vmem:[%s306 + $0x80] sm:$0x1]
      %v340 = vld [vmem:[%s306 + $0x84] sm:$0xf]
      %v341 = vld [vmem:[%s306 + $0x88] sm:$0xf]
      %v342 = vld [vmem:[%s306 + $0x8c] sm:$0x1]
      %v343 = vld [vmem:[%s306 + $0x90] sm:$0xf]
      %v344 = vld [vmem:[%s306 + $0x94] sm:$0xf]
      %v345 = vld [vmem:[%s306 + $0x98] sm:$0x1]
      %v346 = vld [vmem:[%s306 + $0x9c] sm:$0xf]
      %v347 = vld [vmem:[%s306 + $0xa0] sm:$0xf]
      %v348 = vld [vmem:[%s306 + $0xa4] sm:$0x1]
      %v349 = vld [vmem:[%s306 + $0xa8] sm:$0xf]
      %v350 = vld [vmem:[%s306 + $0xac] sm:$0xf]
      %v351 = vld [vmem:[%s306 + $0xb0] sm:$0x1]
      %v352 = vld [vmem:[%s306 + $0xb4] sm:$0xf]
      %v353 = vld [vmem:[%s306 + $0xb8] sm:$0xf]
      %v354 = vld [vmem:[%s306 + $0xbc] sm:$0x1]
      %v355 = vld [vmem:[%s306 + $0xc0] sm:$0xf]
      %v356 = vld [vmem:[%s306 + $0xc4] sm:$0xf]
      %v357 = vld [vmem:[%s306 + $0xc8] sm:$0x1]
      %v358 = vld [vmem:[%s306 + $0xcc] sm:$0xf]
      %v359 = vld [vmem:[%s306 + $0xd0] sm:$0xf]
      %v360 = vld [vmem:[%s306 + $0xd4] sm:$0x1]
      %v393 = vunpack.c.l.b16 %v307
      %v394 = vunpack.c.l.b16 %v308
      %v395 = vunpack.c.l.b16 %v310
      %v396 = vunpack.c.l.b16 %v311
      %v397 = vunpack.c.l.b16 %v313
      %v398 = vunpack.c.l.b16 %v314
      %v399 = vunpack.c.l.b16 %v316
      %v400 = vunpack.c.l.b16 %v317
      %v401 = vunpack.c.l.b16 %v319
      %v402 = vunpack.c.l.b16 %v320
      %v403 = vunpack.c.l.b16 %v322
      %v404 = vunpack.c.l.b16 %v323
      %v405 = vunpack.c.l.b16 %v325
      %v406 = vunpack.c.l.b16 %v326
      %v407 = vunpack.c.l.b16 %v328
      %v408 = vunpack.c.l.b16 %v329
      %v409 = vunpack.c.l.b16 %v331
      %v410 = vunpack.c.l.b16 %v332
      %v411 = vunpack.c.l.b16 %v334
      %v412 = vunpack.c.l.b16 %v335
      %v413 = vunpack.c.l.b16 %v337
      %v414 = vunpack.c.l.b16 %v338
      %v415 = vunpack.c.l.b16 %v340
      %v416 = vunpack.c.l.b16 %v341
      %v417 = vunpack.c.l.b16 %v343
      %v418 = vunpack.c.l.b16 %v344
      %v419 = vunpack.c.l.b16 %v346
      %v420 = vunpack.c.l.b16 %v347
      %v421 = vunpack.c.l.b16 %v349
      %v422 = vunpack.c.l.b16 %v350
      %v423 = vunpack.c.l.b16 %v352
      %v424 = vunpack.c.l.b16 %v353
      %v425 = vpack.c.b16 %v394, %v393
      %v426 = vpack.c.b16 %v396, %v395
      %v427 = vpack.c.b16 %v398, %v397
      %v428 = vpack.c.b16 %v400, %v399
      %v429 = vpack.c.b16 %v402, %v401
      %v430 = vpack.c.b16 %v404, %v403
      %v431 = vpack.c.b16 %v406, %v405
      %v432 = vpack.c.b16 %v408, %v407
      %v433 = vpack.c.b16 %v410, %v409
      %v434 = vpack.c.b16 %v412, %v411
      %v435 = vpack.c.b16 %v414, %v413
      %v436 = vpack.c.b16 %v416, %v415
      %v437 = vpack.c.b16 %v418, %v417
      %v438 = vpack.c.b16 %v420, %v419
      %v439 = vpack.c.b16 %v422, %v421
      %v440 = vpack.c.b16 %v424, %v423
      %v457 = vunpack.c.l.b16 %v309
      %v458 = vunpack.c.l.b16 %v312
      %v459 = vunpack.c.l.b16 %v315
      %v460 = vunpack.c.l.b16 %v318
      %v461 = vunpack.c.l.b16 %v321
      %v462 = vunpack.c.l.b16 %v324
      %v463 = vunpack.c.l.b16 %v327
      %v464 = vunpack.c.l.b16 %v330
      %v465 = vunpack.c.l.b16 %v333
      %v466 = vunpack.c.l.b16 %v336
      %v467 = vunpack.c.l.b16 %v339
      %v468 = vunpack.c.l.b16 %v342
      %v469 = vunpack.c.l.b16 %v345
      %v470 = vunpack.c.l.b16 %v348
      %v471 = vunpack.c.l.b16 %v351
      %v472 = vunpack.c.l.b16 %v354
      %v473 = vpack.c.b16 %v457, %v457
      %v474 = vpack.c.b16 %v458, %v458
      %v475 = vpack.c.b16 %v459, %v459
      %v476 = vpack.c.b16 %v460, %v460
      %v477 = vpack.c.b16 %v461, %v461
      %v478 = vpack.c.b16 %v462, %v462
      %v479 = vpack.c.b16 %v463, %v463
      %v480 = vpack.c.b16 %v464, %v464
      %v481 = vpack.c.b16 %v465, %v465
      %v482 = vpack.c.b16 %v466, %v466
      %v483 = vpack.c.b16 %v467, %v467
      %v484 = vpack.c.b16 %v468, %v468
      %v485 = vpack.c.b16 %v469, %v469
      %v486 = vpack.c.b16 %v470, %v470
      %v487 = vpack.c.b16 %v471, %v471
      %v488 = vpack.c.b16 %v472, %v472
      %vm489 = vsmask.f32 7424
      %v491 = vshrl.u32 %v425, 16
      %v493 = vshll.u32 %v425, 16
      %v495 = vrot.slane %v493, 1
      %v496 = vor.u32 %v491, %v495
      %v498 = vshll.u32 %v473, 16
      %v500 = vrot.slane %v498, 1
      %v501 = vsel %vm489, %v496, %v500
      %v503 = vshrl.u32 %v426, 16
      %v505 = vshll.u32 %v426, 16
      %v507 = vrot.slane %v505, 1
      %v508 = vor.u32 %v503, %v507
      %v510 = vshll.u32 %v474, 16
      %v512 = vrot.slane %v510, 1
      %v513 = vsel %vm489, %v508, %v512
      %v515 = vshrl.u32 %v427, 16
      %v517 = vshll.u32 %v427, 16
      %v519 = vrot.slane %v517, 1
      %v520 = vor.u32 %v515, %v519
      %v522 = vshll.u32 %v475, 16
      %v524 = vrot.slane %v522, 1
      %v525 = vsel %vm489, %v520, %v524
      %v527 = vshrl.u32 %v428, 16
      %v529 = vshll.u32 %v428, 16
      %v531 = vrot.slane %v529, 1
      %v532 = vor.u32 %v527, %v531
      %v534 = vshll.u32 %v476, 16
      %v536 = vrot.slane %v534, 1
      %v537 = vsel %vm489, %v532, %v536
      %v539 = vshrl.u32 %v429, 16
      %v541 = vshll.u32 %v429, 16
      %v543 = vrot.slane %v541, 1
      %v544 = vor.u32 %v539, %v543
      %v546 = vshll.u32 %v477, 16
      %v548 = vrot.slane %v546, 1
      %v549 = vsel %vm489, %v544, %v548
      %v551 = vshrl.u32 %v430, 16
      %v553 = vshll.u32 %v430, 16
      %v555 = vrot.slane %v553, 1
      %v556 = vor.u32 %v551, %v555
      %v558 = vshll.u32 %v478, 16
      %v560 = vrot.slane %v558, 1
      %v561 = vsel %vm489, %v556, %v560
      %v563 = vshrl.u32 %v431, 16
      %v565 = vshll.u32 %v431, 16
      %v567 = vrot.slane %v565, 1
      %v568 = vor.u32 %v563, %v567
      %v570 = vshll.u32 %v479, 16
      %v572 = vrot.slane %v570, 1
      %v573 = vsel %vm489, %v568, %v572
      %v575 = vshrl.u32 %v432, 16
      %v577 = vshll.u32 %v432, 16
      %v579 = vrot.slane %v577, 1
      %v580 = vor.u32 %v575, %v579
      %v582 = vshll.u32 %v480, 16
      %v584 = vrot.slane %v582, 1
      %v585 = vsel %vm489, %v580, %v584
      %v587 = vshrl.u32 %v433, 16
      %v589 = vshll.u32 %v433, 16
      %v591 = vrot.slane %v589, 1
      %v592 = vor.u32 %v587, %v591
      %v594 = vshll.u32 %v481, 16
      %v596 = vrot.slane %v594, 1
      %v597 = vsel %vm489, %v592, %v596
      %v599 = vshrl.u32 %v434, 16
      %v601 = vshll.u32 %v434, 16
      %v603 = vrot.slane %v601, 1
      %v604 = vor.u32 %v599, %v603
      %v606 = vshll.u32 %v482, 16
      %v608 = vrot.slane %v606, 1
      %v609 = vsel %vm489, %v604, %v608
      %v611 = vshrl.u32 %v435, 16
      %v613 = vshll.u32 %v435, 16
      %v615 = vrot.slane %v613, 1
      %v616 = vor.u32 %v611, %v615
      %v618 = vshll.u32 %v483, 16
      %v620 = vrot.slane %v618, 1
      %v621 = vsel %vm489, %v616, %v620
      %v623 = vshrl.u32 %v436, 16
      %v625 = vshll.u32 %v436, 16
      %v627 = vrot.slane %v625, 1
      %v628 = vor.u32 %v623, %v627
      %v630 = vshll.u32 %v484, 16
      %v632 = vrot.slane %v630, 1
      %v633 = vsel %vm489, %v628, %v632
      %v635 = vshrl.u32 %v437, 16
      %v637 = vshll.u32 %v437, 16
      %v639 = vrot.slane %v637, 1
      %v640 = vor.u32 %v635, %v639
      %v642 = vshll.u32 %v485, 16
      %v644 = vrot.slane %v642, 1
      %v645 = vsel %vm489, %v640, %v644
      %v647 = vshrl.u32 %v438, 16
      %v649 = vshll.u32 %v438, 16
      %v651 = vrot.slane %v649, 1
      %v652 = vor.u32 %v647, %v651
      %v654 = vshll.u32 %v486, 16
      %v656 = vrot.slane %v654, 1
      %v657 = vsel %vm489, %v652, %v656
      %v659 = vshrl.u32 %v439, 16
      %v661 = vshll.u32 %v439, 16
      %v663 = vrot.slane %v661, 1
      %v664 = vor.u32 %v659, %v663
      %v666 = vshll.u32 %v487, 16
      %v668 = vrot.slane %v666, 1
      %v669 = vsel %vm489, %v664, %v668
      %v671 = vshrl.u32 %v440, 16
      %v673 = vshll.u32 %v440, 16
      %v675 = vrot.slane %v673, 1
      %v676 = vor.u32 %v671, %v675
      %v678 = vshll.u32 %v488, 16
      %v680 = vrot.slane %v678, 1
      %v681 = vsel %vm489, %v676, %v680
      %682 = vrot.lane.b32.xlu0 %v501, 64
      %v683 = vpop.permute.xlu0 %682
      %684 = vrot.lane.b32.xlu0 %v513, 64
      %v685 = vpop.permute.xlu0 %684
      %686 = vrot.lane.b32.xlu0 %v525, 64
      %v687 = vpop.permute.xlu0 %686
      %688 = vrot.lane.b32.xlu0 %v537, 64
      %v689 = vpop.permute.xlu0 %688
      %690 = vrot.lane.b32.xlu0 %v549, 64
      %v691 = vpop.permute.xlu0 %690
      %692 = vrot.lane.b32.xlu0 %v561, 64
      %v693 = vpop.permute.xlu0 %692
      %694 = vrot.lane.b32.xlu0 %v573, 64
      %v695 = vpop.permute.xlu0 %694
      %696 = vrot.lane.b32.xlu0 %v585, 64
      %v697 = vpop.permute.xlu0 %696
      %698 = vrot.lane.b32.xlu0 %v597, 64
      %v699 = vpop.permute.xlu0 %698
      %700 = vrot.lane.b32.xlu0 %v609, 64
      %v701 = vpop.permute.xlu0 %700
      %702 = vrot.lane.b32.xlu0 %v621, 64
      %v703 = vpop.permute.xlu0 %702
      %704 = vrot.lane.b32.xlu0 %v633, 64
      %v705 = vpop.permute.xlu0 %704
      %706 = vrot.lane.b32.xlu0 %v645, 64
      %v707 = vpop.permute.xlu0 %706
      %708 = vrot.lane.b32.xlu0 %v657, 64
      %v709 = vpop.permute.xlu0 %708
      %710 = vrot.lane.b32.xlu0 %v669, 64
      %v711 = vpop.permute.xlu0 %710
      %712 = vrot.lane.b32.xlu0 %v681, 64
      %v713 = vpop.permute.xlu0 %712
      %vm714 = vcmask 1046528
      %v715 = vrot.slane %v425, 1
      %v716 = vrot.slane %v473, 1
      %v717 = vsel %vm714, %v715, %v716
      %v718 = vrot.slane %v426, 1
      %v719 = vrot.slane %v474, 1
      %v720 = vsel %vm714, %v718, %v719
      %v721 = vrot.slane %v427, 1
      %v722 = vrot.slane %v475, 1
      %v723 = vsel %vm714, %v721, %v722
      %v724 = vrot.slane %v428, 1
      %v725 = vrot.slane %v476, 1
      %v726 = vsel %vm714, %v724, %v725
      %v727 = vrot.slane %v429, 1
      %v728 = vrot.slane %v477, 1
      %v729 = vsel %vm714, %v727, %v728
      %v730 = vrot.slane %v430, 1
      %v731 = vrot.slane %v478, 1
      %v732 = vsel %vm714, %v730, %v731
      %v733 = vrot.slane %v431, 1
      %v734 = vrot.slane %v479, 1
      %v735 = vsel %vm714, %v733, %v734
      %v736 = vrot.slane %v432, 1
      %v737 = vrot.slane %v480, 1
      %v738 = vsel %vm714, %v736, %v737
      %v739 = vrot.slane %v433, 1
      %v740 = vrot.slane %v481, 1
      %v741 = vsel %vm714, %v739, %v740
      %v742 = vrot.slane %v434, 1
      %v743 = vrot.slane %v482, 1
      %v744 = vsel %vm714, %v742, %v743
      %v745 = vrot.slane %v435, 1
      %v746 = vrot.slane %v483, 1
      %v747 = vsel %vm714, %v745, %v746
      %v748 = vrot.slane %v436, 1
      %v749 = vrot.slane %v484, 1
      %v750 = vsel %vm714, %v748, %v749
      %v751 = vrot.slane %v437, 1
      %v752 = vrot.slane %v485, 1
      %v753 = vsel %vm714, %v751, %v752
      %v754 = vrot.slane %v438, 1
      %v755 = vrot.slane %v486, 1
      %v756 = vsel %vm714, %v754, %v755
      %v757 = vrot.slane %v439, 1
      %v758 = vrot.slane %v487, 1
      %v759 = vsel %vm714, %v757, %v758
      %v760 = vrot.slane %v440, 1
      %v761 = vrot.slane %v488, 1
      %v762 = vsel %vm714, %v760, %v761
      %vm763 = vcmask 523264
      %v765 = vsel %vm763, %v425, %v683
      %v768 = vsel %vm763, %v426, %v685
      %v771 = vsel %vm763, %v427, %v687
      %v774 = vsel %vm763, %v428, %v689
      %v777 = vsel %vm763, %v429, %v691
      %v780 = vsel %vm763, %v430, %v693
      %v783 = vsel %vm763, %v431, %v695
      %v786 = vsel %vm763, %v432, %v697
      %v789 = vsel %vm763, %v433, %v699
      %v792 = vsel %vm763, %v434, %v701
      %v795 = vsel %vm763, %v435, %v703
      %v798 = vsel %vm763, %v436, %v705
      %v801 = vsel %vm763, %v437, %v707
      %v804 = vsel %vm763, %v438, %v709
      %v807 = vsel %vm763, %v439, %v711
      %v810 = vsel %vm763, %v440, %v713
      %v812 = vld [vmem:[%s1] sm:$0xf]
      %v813 = vld [vmem:[%s1 + $0x4] sm:$0xf]
      %v814 = vld [vmem:[%s1 + $0x8] sm:$0xf]
      %v815 = vld [vmem:[%s1 + $0xc] sm:$0xf]
      %v816 = vld [vmem:[%s1 + $0x10] sm:$0xf]
      %v817 = vld [vmem:[%s1 + $0x14] sm:$0xf]
      %v818 = vld [vmem:[%s1 + $0x18] sm:$0xf]
      %v819 = vld [vmem:[%s1 + $0x1c] sm:$0xf]
      %v820 = vld [vmem:[%s1 + $0x20] sm:$0xf]
      %v821 = vld [vmem:[%s1 + $0x24] sm:$0xf]
      %v822 = vld [vmem:[%s1 + $0x28] sm:$0xf]
      %v823 = vld [vmem:[%s1 + $0x2c] sm:$0xf]
      %v824 = vld [vmem:[%s1 + $0x30] sm:$0xf]
      %v825 = vld [vmem:[%s1 + $0x34] sm:$0xf]
      %v826 = vld [vmem:[%s1 + $0x38] sm:$0xf]
      %v827 = vld [vmem:[%s1 + $0x3c] sm:$0xf]
      %v828 = vld [vmem:[%s1 + $0x40] sm:$0xf]
      %v829 = vld [vmem:[%s1 + $0x44] sm:$0xf]
      %v830 = vld [vmem:[%s1 + $0x48] sm:$0xf]
      %v831 = vld [vmem:[%s1 + $0x4c] sm:$0xf]
      %v832 = vld [vmem:[%s1 + $0x50] sm:$0xf]
      %v833 = vld [vmem:[%s1 + $0x54] sm:$0xf]
      %v834 = vld [vmem:[%s1 + $0x58] sm:$0xf]
      %v835 = vld [vmem:[%s1 + $0x5c] sm:$0xf]
      %v838 = vunpack.c.l.b16 %v355
      %v839 = vunpack.c.l.b16 %v356
      %v840 = vpack.c.b16 %v839, %v838
      %v842 = vunpack.c.l.b16 %v357
      %v843 = vpack.c.b16 %v842, %v842
      %v845 = vshrl.u32 %v840, 16
      %v847 = vshll.u32 %v840, 16
      %v849 = vrot.slane %v847, 1
      %v850 = vor.u32 %v845, %v849
      %v852 = vshll.u32 %v843, 16
      %v854 = vrot.slane %v852, 1
      %v855 = vsel %vm489, %v850, %v854
      %856 = vrot.lane.b32.xlu0 %v855, 64
      %v857 = vpop.permute.xlu0 %856
      %v858 = vrot.slane %v840, 1
      %v859 = vrot.slane %v843, 1
      %v860 = vsel %vm714, %v858, %v859
      %v862 = vsel %vm763, %v840, %v857
      %v864 = vld [vmem:[%s1 + $0x60] sm:$0xf]
      %v865 = vld [vmem:[%s1 + $0x64] sm:$0xf]
      %v866 = vld [vmem:[%s1 + $0x68] sm:$0xf]
      %v867 = vld [vmem:[%s1 + $0x6c] sm:$0xf]
      %v868 = vld [vmem:[%s1 + $0x70] sm:$0xf]
      %v869 = vld [vmem:[%s1 + $0x74] sm:$0xf]
      %v870 = vld [vmem:[%s1 + $0x78] sm:$0xf]
      %v871 = vld [vmem:[%s1 + $0x7c] sm:$0xf]
      %v872 = vld [vmem:[%s1 + $0x80] sm:$0xf]
      %v873 = vld [vmem:[%s1 + $0x84] sm:$0xf]
      %v874 = vld [vmem:[%s1 + $0x88] sm:$0xf]
      %v875 = vld [vmem:[%s1 + $0x8c] sm:$0xf]
      %v876 = vld [vmem:[%s1 + $0x90] sm:$0xf]
      %v877 = vld [vmem:[%s1 + $0x94] sm:$0xf]
      %v878 = vld [vmem:[%s1 + $0x98] sm:$0xf]
      %v879 = vld [vmem:[%s1 + $0x9c] sm:$0xf]
      %v880 = vld [vmem:[%s1 + $0xa0] sm:$0xf]
      %v881 = vld [vmem:[%s1 + $0xa4] sm:$0xf]
      %v882 = vld [vmem:[%s1 + $0xa8] sm:$0xf]
      %v883 = vld [vmem:[%s1 + $0xac] sm:$0xf]
      %v884 = vld [vmem:[%s1 + $0xb0] sm:$0xf]
      %v885 = vld [vmem:[%s1 + $0xb4] sm:$0xf]
      %v886 = vld [vmem:[%s1 + $0xb8] sm:$0xf]
      %v887 = vld [vmem:[%s1 + $0xbc] sm:$0xf]
      %v912 = vunpack.c.l.b16 %v864
      %v913 = vunpack.c.l.b16 %v865
      %v914 = vunpack.c.l.b16 %v866
      %v915 = vunpack.c.l.b16 %v867
      %v916 = vunpack.c.l.b16 %v868
      %v917 = vunpack.c.l.b16 %v869
      %v918 = vunpack.c.l.b16 %v870
      %v919 = vunpack.c.l.b16 %v871
      %v920 = vunpack.c.l.b16 %v872
      %v921 = vunpack.c.l.b16 %v873
      %v922 = vunpack.c.l.b16 %v874
      %v923 = vunpack.c.l.b16 %v875
      %v924 = vunpack.c.l.b16 %v876
      %v925 = vunpack.c.l.b16 %v877
      %v926 = vunpack.c.l.b16 %v878
      %v927 = vunpack.c.l.b16 %v879
      %v928 = vunpack.c.l.b16 %v880
      %v929 = vunpack.c.l.b16 %v881
      %v930 = vunpack.c.l.b16 %v882
      %v931 = vunpack.c.l.b16 %v883
      %v932 = vunpack.c.l.b16 %v884
      %v933 = vunpack.c.l.b16 %v885
      %v934 = vunpack.c.l.b16 %v886
      %v935 = vunpack.c.l.b16 %v887
      %v936 = vpack.c.b16 %v913, %v912
      %v937 = vpack.c.b16 %v915, %v914
      %v938 = vpack.c.b16 %v917, %v916
      %v939 = vpack.c.b16 %v919, %v918
      %v940 = vpack.c.b16 %v921, %v920
      %v941 = vpack.c.b16 %v923, %v922
      %v942 = vpack.c.b16 %v925, %v924
      %v943 = vpack.c.b16 %v927, %v926
      %v944 = vpack.c.b16 %v929, %v928
      %v945 = vpack.c.b16 %v931, %v930
      %v946 = vpack.c.b16 %v933, %v932
      %v947 = vpack.c.b16 %v935, %v934
      %v961 = vsel %vm763, %v720, 0
      %v964 = vsel %vm763, %v723, 0
      %v967 = vsel %vm763, %v726, 0
      %v970 = vsel %vm763, %v729, 0
      %v973 = vsel %vm763, %v732, 0
      %v976 = vsel %vm763, %v735, 0
      %v979 = vsel %vm763, %v738, 0
      %v982 = vsel %vm763, %v741, 0
      %v985 = vsel %vm763, %v744, 0
      %v988 = vsel %vm763, %v747, 0
      %v991 = vsel %vm763, %v750, 0
      %v994 = vsel %vm763, %v753, 0
      %v997 = vsel %vm763, %v756, 0
      %v1000 = vsel %vm763, %v759, 0
      %v1003 = vsel %vm763, %v762, 0
      %v1006 = vsel %vm763, %v860, 0
      %1008 = vmatprep.subr.bf16.mxu0 0
      %1009 = vmatpush1.bf16.msra.mxu0 %v936
      %1010 = vmatprep.subr.bf16.mxu0 0
      %1011 = vmatpush1.bf16.msra.mxu0 %v937
      %1012 = vmatprep.subr.bf16.mxu0 0
      %1013 = vmatpush1.bf16.msra.mxu0 %v938
      %1014 = vmatprep.subr.bf16.mxu0 0
      %1015 = vmatpush1.bf16.msra.mxu0 %v939
      %1016 = vmatprep.subr.bf16.mxu0 0
      %1017 = vmatpush1.bf16.msra.mxu0 %v940
      %1018 = vmatprep.subr.bf16.mxu0 0
      %1019 = vmatpush1.bf16.msra.mxu0 %v941
      %1020 = vmatprep.subr.bf16.mxu0 0
      %1021 = vmatpush1.bf16.msra.mxu0 %v942
      %1022 = vmatprep.subr.bf16.mxu0 0
      %1023 = vmatpush1.bf16.msra.mxu0 %v943
      %1024 = vmatprep.subr.bf16.mxu0 0
      %1025 = vmatpush1.bf16.msra.mxu0 %v944
      %1026 = vmatprep.subr.bf16.mxu0 0
      %1027 = vmatpush1.bf16.msra.mxu0 %v945
      %1028 = vmatprep.subr.bf16.mxu0 0
      %1029 = vmatpush1.bf16.msra.mxu0 %v946
      %1030 = vmatprep.subr.bf16.mxu0 0
      %1031 = vmatpush1.bf16.msra.mxu0 %v947
      %1032 = vmatprep.subr.bf16.mxu0 0
      %1033 = vmatpush1.bf16.msra.mxu0 0
      %1034 = vmatprep.subr.bf16.mxu0 0
      %1035 = vmatpush1.bf16.msra.mxu0 0
      %1036 = vmatprep.subr.bf16.mxu0 0
      %1037 = vmatpush1.bf16.msra.mxu0 0
      %1038 = vmatprep.subr.bf16.mxu0 0
      %1039 = vmatpush1.bf16.msra.mxu0 0
      %1040 = vmatprep.mubr.bf16.mxu0 %v961
      %1041 = vmatmul.mubr.bf16.gmra.mrb[0].mxu0 %v768
      %v1042 = vpop.f32.mrb[0].mxu0
      %v1043 = vadd.f32 0.0, %v1042
      %v1044 = vpop.f32.mrb[0].mxu0
      %v1045 = vpop.f32.mrb[0].mxu0
      %v1046 = vadd.f32 0.0, %v1045
      %v1047 = vpop.f32.mrb[0].mxu0
      %1048 = vmatprep.mubr.bf16.mxu0 %v964
      %1049 = vmatmul.mubr.bf16.gmra.mrb[0].mxu0 %v771
      %v1050 = vpop.f32.mrb[0].mxu0
      %v1051 = vadd.f32 0.0, %v1050
      %v1052 = vpop.f32.mrb[0].mxu0
      %v1053 = vpop.f32.mrb[0].mxu0
      %v1054 = vadd.f32 0.0, %v1053
      %v1055 = vpop.f32.mrb[0].mxu0
      %1056 = vmatprep.mubr.bf16.mxu0 %v967
      %1057 = vmatmul.mubr.bf16.gmra.mrb[0].mxu0 %v774
      %v1058 = vpop.f32.mrb[0].mxu0
      %v1059 = vadd.f32 0.0, %v1058
      %v1060 = vpop.f32.mrb[0].mxu0
      %v1061 = vpop.f32.mrb[0].mxu0
      %v1062 = vadd.f32 0.0, %v1061
      %v1063 = vpop.f32.mrb[0].mxu0
      %1064 = vmatprep.mubr.bf16.mxu0 %v970
      %1065 = vmatmul.mubr.bf16.gmra.mrb[0].mxu0 %v777
      %v1066 = vpop.f32.mrb[0].mxu0
      %v1067 = vadd.f32 0.0, %v1066
      %v1068 = vpop.f32.mrb[0].mxu0
      %v1069 = vpop.f32.mrb[0].mxu0
      %v1070 = vadd.f32 0.0, %v1069
      %v1071 = vpop.f32.mrb[0].mxu0
      %1072 = vmatprep.mubr.bf16.mxu0 %v973
      %1073 = vmatmul.mubr.bf16.gmra.mrb[0].mxu0 %v780
      %v1074 = vpop.f32.mrb[0].mxu0
      %v1075 = vadd.f32 0.0, %v1074
      %v1076 = vpop.f32.mrb[0].mxu0
      %v1077 = vpop.f32.mrb[0].mxu0
      %v1078 = vadd.f32 0.0, %v1077
      %v1079 = vpop.f32.mrb[0].mxu0
      %1080 = vmatprep.mubr.bf16.mxu0 %v976
      %1081 = vmatmul.mubr.bf16.gmra.mrb[0].mxu0 %v783
      %v1082 = vpop.f32.mrb[0].mxu0
      %v1083 = vadd.f32 0.0, %v1082
      %v1084 = vpop.f32.mrb[0].mxu0
      %v1085 = vpop.f32.mrb[0].mxu0
      %v1086 = vadd.f32 0.0, %v1085
      %v1087 = vpop.f32.mrb[0].mxu0
      %1088 = vmatprep.mubr.bf16.mxu0 %v979
      %1089 = vmatmul.mubr.bf16.gmra.mrb[0].mxu0 %v786
      %v1090 = vpop.f32.mrb[0].mxu0
      %v1091 = vadd.f32 0.0, %v1090
      %v1092 = vpop.f32.mrb[0].mxu0
      %v1093 = vpop.f32.mrb[0].mxu0
      %v1094 = vadd.f32 0.0, %v1093
      %v1095 = vpop.f32.mrb[0].mxu0
      %1096 = vmatprep.mubr.bf16.mxu0 %v982
      %1097 = vmatmul.mubr.bf16.gmra.mrb[0].mxu0 %v789
      %v1098 = vpop.f32.mrb[0].mxu0
      %v1099 = vadd.f32 0.0, %v1098
      %v1100 = vpop.f32.mrb[0].mxu0
      %v1101 = vpop.f32.mrb[0].mxu0
      %v1102 = vadd.f32 0.0, %v1101
      %v1103 = vpop.f32.mrb[0].mxu0
      %1104 = vmatprep.mubr.bf16.mxu0 %v985
      %1105 = vmatmul.mubr.bf16.gmra.mrb[0].mxu0 %v792
      %v1106 = vpop.f32.mrb[0].mxu0
      %v1107 = vadd.f32 0.0, %v1106
      %v1108 = vpop.f32.mrb[0].mxu0
      %v1109 = vpop.f32.mrb[0].mxu0
      %v1110 = vadd.f32 0.0, %v1109
      %v1111 = vpop.f32.mrb[0].mxu0
      %1112 = vmatprep.mubr.bf16.mxu0 %v988
      %1113 = vmatmul.mubr.bf16.gmra.mrb[0].mxu0 %v795
      %v1114 = vpop.f32.mrb[0].mxu0
      %v1115 = vadd.f32 0.0, %v1114
      %v1116 = vpop.f32.mrb[0].mxu0
      %v1117 = vpop.f32.mrb[0].mxu0
      %v1118 = vadd.f32 0.0, %v1117
      %v1119 = vpop.f32.mrb[0].mxu0
      %1120 = vmatprep.mubr.bf16.mxu0 %v991
      %1121 = vmatmul.mubr.bf16.gmra.mrb[0].mxu0 %v798
      %v1122 = vpop.f32.mrb[0].mxu0
      %v1123 = vadd.f32 0.0, %v1122
      %v1124 = vpop.f32.mrb[0].mxu0
      %v1125 = vpop.f32.mrb[0].mxu0
      %v1126 = vadd.f32 0.0, %v1125
      %v1127 = vpop.f32.mrb[0].mxu0
      %1128 = vmatprep.mubr.bf16.mxu0 %v994
      %1129 = vmatmul.mubr.bf16.gmra.mrb[0].mxu0 %v801
      %v1130 = vpop.f32.mrb[0].mxu0
      %v1131 = vadd.f32 0.0, %v1130
      %v1132 = vpop.f32.mrb[0].mxu0
      %v1133 = vpop.f32.mrb[0].mxu0
      %v1134 = vadd.f32 0.0, %v1133
      %v1135 = vpop.f32.mrb[0].mxu0
      %1136 = vmatprep.mubr.bf16.mxu0 %v997
      %1137 = vmatmul.mubr.bf16.gmra.mrb[0].mxu0 %v804
      %v1138 = vpop.f32.mrb[0].mxu0
      %v1139 = vadd.f32 0.0, %v1138
      %v1140 = vpop.f32.mrb[0].mxu0
      %v1141 = vpop.f32.mrb[0].mxu0
      %v1142 = vadd.f32 0.0, %v1141
      %v1143 = vpop.f32.mrb[0].mxu0
      %1144 = vmatprep.mubr.bf16.mxu0 %v1000
      %1145 = vmatmul.mubr.bf16.gmra.mrb[0].mxu0 %v807
      %v1146 = vpop.f32.mrb[0].mxu0
      %v1147 = vadd.f32 0.0, %v1146
      %v1148 = vpop.f32.mrb[0].mxu0
      %v1149 = vpop.f32.mrb[0].mxu0
      %v1150 = vadd.f32 0.0, %v1149
      %v1151 = vpop.f32.mrb[0].mxu0
      %1152 = vmatprep.mubr.bf16.mxu0 %v1003
      %1153 = vmatmul.mubr.bf16.gmra.mrb[0].mxu0 %v810
      %v1154 = vpop.f32.mrb[0].mxu0
      %v1155 = vadd.f32 0.0, %v1154
      %v1156 = vpop.f32.mrb[0].mxu0
      %v1157 = vpop.f32.mrb[0].mxu0
      %v1158 = vadd.f32 0.0, %v1157
      %v1159 = vpop.f32.mrb[0].mxu0
      %1160 = vmatprep.mubr.bf16.mxu0 %v1006
      %1161 = vmatmul.mubr.bf16.gmra.mrb[0].mxu0 %v862
      %v1162 = vpop.f32.mrb[0].mxu0
      %v1163 = vadd.f32 0.0, %v1162
      %v1164 = vpop.f32.mrb[0].mxu0
      %v1165 = vpop.f32.mrb[0].mxu0
      %v1166 = vadd.f32 0.0, %v1165
      %v1167 = vpop.f32.mrb[0].mxu0
      %1168 = vdwg.mxu0
      %v1193 = vunpack.c.l.b16 %v812
      %v1194 = vunpack.c.l.b16 %v813
      %v1195 = vunpack.c.l.b16 %v814
      %v1196 = vunpack.c.l.b16 %v815
      %v1197 = vunpack.c.l.b16 %v816
      %v1198 = vunpack.c.l.b16 %v817
      %v1199 = vunpack.c.l.b16 %v818
      %v1200 = vunpack.c.l.b16 %v819
      %v1201 = vunpack.c.l.b16 %v820
      %v1202 = vunpack.c.l.b16 %v821
      %v1203 = vunpack.c.l.b16 %v822
      %v1204 = vunpack.c.l.b16 %v823
      %v1205 = vunpack.c.l.b16 %v824
      %v1206 = vunpack.c.l.b16 %v825
      %v1207 = vunpack.c.l.b16 %v826
      %v1208 = vunpack.c.l.b16 %v827
      %v1209 = vunpack.c.l.b16 %v828
      %v1210 = vunpack.c.l.b16 %v829
      %v1211 = vunpack.c.l.b16 %v830
      %v1212 = vunpack.c.l.b16 %v831
      %v1213 = vunpack.c.l.b16 %v832
      %v1214 = vunpack.c.l.b16 %v833
      %v1215 = vunpack.c.l.b16 %v834
      %v1216 = vunpack.c.l.b16 %v835
      %v1217 = vpack.c.b16 %v1194, %v1193
      %v1218 = vpack.c.b16 %v1196, %v1195
      %v1219 = vpack.c.b16 %v1198, %v1197
      %v1220 = vpack.c.b16 %v1200, %v1199
      %v1221 = vpack.c.b16 %v1202, %v1201
      %v1222 = vpack.c.b16 %v1204, %v1203
      %v1223 = vpack.c.b16 %v1206, %v1205
      %v1224 = vpack.c.b16 %v1208, %v1207
      %v1225 = vpack.c.b16 %v1210, %v1209
      %v1226 = vpack.c.b16 %v1212, %v1211
      %v1227 = vpack.c.b16 %v1214, %v1213
      %v1228 = vpack.c.b16 %v1216, %v1215
      %v1242 = vsel %vm763, %v717, 0
      %1244 = vmatprep.subr.bf16.mxu0 0
      %1245 = vmatpush1.bf16.msra.mxu0 %v1217
      %1246 = vmatprep.subr.bf16.mxu0 0
      %1247 = vmatpush1.bf16.msra.mxu0 %v1218
      %1248 = vmatprep.subr.bf16.mxu0 0
      %1249 = vmatpush1.bf16.msra.mxu0 %v1219
      %1250 = vmatprep.subr.bf16.mxu0 0
      %1251 = vmatpush1.bf16.msra.mxu0 %v1220
      %1252 = vmatprep.subr.bf16.mxu0 0
      %1253 = vmatpush1.bf16.msra.mxu0 %v1221
      %1254 = vmatprep.subr.bf16.mxu0 0
      %1255 = vmatpush1.bf16.msra.mxu0 %v1222
      %1256 = vmatprep.subr.bf16.mxu0 0
      %1257 = vmatpush1.bf16.msra.mxu0 %v1223
      %1258 = vmatprep.subr.bf16.mxu0 0
      %1259 = vmatpush1.bf16.msra.mxu0 %v1224
      %1260 = vmatprep.subr.bf16.mxu0 0
      %1261 = vmatpush1.bf16.msra.mxu0 %v1225
      %1262 = vmatprep.subr.bf16.mxu0 0
      %1263 = vmatpush1.bf16.msra.mxu0 %v1226
      %1264 = vmatprep.subr.bf16.mxu0 0
      %1265 = vmatpush1.bf16.msra.mxu0 %v1227
      %1266 = vmatprep.subr.bf16.mxu0 0
      %1267 = vmatpush1.bf16.msra.mxu0 %v1228
      %1268 = vmatprep.subr.bf16.mxu0 0
      %1269 = vmatpush1.bf16.msra.mxu0 0
      %1270 = vmatprep.subr.bf16.mxu0 0
      %1271 = vmatpush1.bf16.msra.mxu0 0
      %1272 = vmatprep.subr.bf16.mxu0 0
      %1273 = vmatpush1.bf16.msra.mxu0 0
      %1274 = vmatprep.subr.bf16.mxu0 0
      %1275 = vmatpush1.bf16.msra.mxu0 0
      %1276 = vmatprep.mubr.bf16.mxu0 %v1242
      %1277 = vmatmul.mubr.bf16.gmra.mrb[0].mxu0 %v765
      %v1278 = vpop.f32.mrb[0].mxu0
      %v1279 = vadd.f32 %v1043, %v1278
      %v1280 = vpop.f32.mrb[0].mxu0
      %v1281 = vpop.f32.mrb[0].mxu0
      %v1282 = vadd.f32 %v1046, %v1281
      %v1283 = vpop.f32.mrb[0].mxu0
      %1284 = vmatprep.mubr.bf16.mxu0 %v961
      %1285 = vmatmul.mubr.bf16.gmra.mrb[0].mxu0 %v768
      %v1286 = vpop.f32.mrb[0].mxu0
      %v1287 = vadd.f32 %v1051, %v1286
      %v1288 = vpop.f32.mrb[0].mxu0
      %v1289 = vpop.f32.mrb[0].mxu0
      %v1290 = vadd.f32 %v1054, %v1289
      %v1291 = vpop.f32.mrb[0].mxu0
      %1292 = vmatprep.mubr.bf16.mxu0 %v964
      %1293 = vmatmul.mubr.bf16.gmra.mrb[0].mxu0 %v771
      %v1294 = vpop.f32.mrb[0].mxu0
      %v1295 = vadd.f32 %v1059, %v1294
      %v1296 = vpop.f32.mrb[0].mxu0
      %v1297 = vpop.f32.mrb[0].mxu0
      %v1298 = vadd.f32 %v1062, %v1297
      %v1299 = vpop.f32.mrb[0].mxu0
      %1300 = vmatprep.mubr.bf16.mxu0 %v967
      %1301 = vmatmul.mubr.bf16.gmra.mrb[0].mxu0 %v774
      %v1302 = vpop.f32.mrb[0].mxu0
      %v1303 = vadd.f32 %v1067, %v1302
      %v1304 = vpop.f32.mrb[0].mxu0
      %v1305 = vpop.f32.mrb[0].mxu0
      %v1306 = vadd.f32 %v1070, %v1305
      %v1307 = vpop.f32.mrb[0].mxu0
      %1308 = vmatprep.mubr.bf16.mxu0 %v970
      %1309 = vmatmul.mubr.bf16.gmra.mrb[0].mxu0 %v777
      %v1310 = vpop.f32.mrb[0].mxu0
      %v1311 = vadd.f32 %v1075, %v1310
      %v1312 = vpop.f32.mrb[0].mxu0
      %v1313 = vpop.f32.mrb[0].mxu0
      %v1314 = vadd.f32 %v1078, %v1313
      %v1315 = vpop.f32.mrb[0].mxu0
      %1316 = vmatprep.mubr.bf16.mxu0 %v973
      %1317 = vmatmul.mubr.bf16.gmra.mrb[0].mxu0 %v780
      %v1318 = vpop.f32.mrb[0].mxu0
      %v1319 = vadd.f32 %v1083, %v1318
      %v1320 = vpop.f32.mrb[0].mxu0
      %v1321 = vpop.f32.mrb[0].mxu0
      %v1322 = vadd.f32 %v1086, %v1321
      %v1323 = vpop.f32.mrb[0].mxu0
      %1324 = vmatprep.mubr.bf16.mxu0 %v976
      %1325 = vmatmul.mubr.bf16.gmra.mrb[0].mxu0 %v783
      %v1326 = vpop.f32.mrb[0].mxu0
      %v1327 = vadd.f32 %v1091, %v1326
      %v1328 = vpop.f32.mrb[0].mxu0
      %v1329 = vpop.f32.mrb[0].mxu0
      %v1330 = vadd.f32 %v1094, %v1329
      %v1331 = vpop.f32.mrb[0].mxu0
      %1332 = vmatprep.mubr.bf16.mxu0 %v979
      %1333 = vmatmul.mubr.bf16.gmra.mrb[0].mxu0 %v786
      %v1334 = vpop.f32.mrb[0].mxu0
      %v1335 = vadd.f32 %v1099, %v1334
      %v1336 = vpop.f32.mrb[0].mxu0
      %v1337 = vpop.f32.mrb[0].mxu0
      %v1338 = vadd.f32 %v1102, %v1337
      %v1339 = vpop.f32.mrb[0].mxu0
      %1340 = vmatprep.mubr.bf16.mxu0 %v982
      %1341 = vmatmul.mubr.bf16.gmra.mrb[0].mxu0 %v789
      %v1342 = vpop.f32.mrb[0].mxu0
      %v1343 = vadd.f32 %v1107, %v1342
      %v1344 = vpop.f32.mrb[0].mxu0
      %v1345 = vpop.f32.mrb[0].mxu0
      %v1346 = vadd.f32 %v1110, %v1345
      %v1347 = vpop.f32.mrb[0].mxu0
      %1348 = vmatprep.mubr.bf16.mxu0 %v985
      %1349 = vmatmul.mubr.bf16.gmra.mrb[0].mxu0 %v792
      %v1350 = vpop.f32.mrb[0].mxu0
      %v1351 = vadd.f32 %v1115, %v1350
      %v1352 = vpop.f32.mrb[0].mxu0
      %v1353 = vpop.f32.mrb[0].mxu0
      %v1354 = vadd.f32 %v1118, %v1353
      %v1355 = vpop.f32.mrb[0].mxu0
      %1356 = vmatprep.mubr.bf16.mxu0 %v988
      %1357 = vmatmul.mubr.bf16.gmra.mrb[0].mxu0 %v795
      %v1358 = vpop.f32.mrb[0].mxu0
      %v1359 = vadd.f32 %v1123, %v1358
      %v1360 = vpop.f32.mrb[0].mxu0
      %v1361 = vpop.f32.mrb[0].mxu0
      %v1362 = vadd.f32 %v1126, %v1361
      %v1363 = vpop.f32.mrb[0].mxu0
      %1364 = vmatprep.mubr.bf16.mxu0 %v991
      %1365 = vmatmul.mubr.bf16.gmra.mrb[0].mxu0 %v798
      %v1366 = vpop.f32.mrb[0].mxu0
      %v1367 = vadd.f32 %v1131, %v1366
      %v1368 = vpop.f32.mrb[0].mxu0
      %v1369 = vpop.f32.mrb[0].mxu0
      %v1370 = vadd.f32 %v1134, %v1369
      %v1371 = vpop.f32.mrb[0].mxu0
      %1372 = vmatprep.mubr.bf16.mxu0 %v994
      %1373 = vmatmul.mubr.bf16.gmra.mrb[0].mxu0 %v801
      %v1374 = vpop.f32.mrb[0].mxu0
      %v1375 = vadd.f32 %v1139, %v1374
      %v1376 = vpop.f32.mrb[0].mxu0
      %v1377 = vpop.f32.mrb[0].mxu0
      %v1378 = vadd.f32 %v1142, %v1377
      %v1379 = vpop.f32.mrb[0].mxu0
      %1380 = vmatprep.mubr.bf16.mxu0 %v997
      %1381 = vmatmul.mubr.bf16.gmra.mrb[0].mxu0 %v804
      %v1382 = vpop.f32.mrb[0].mxu0
      %v1383 = vadd.f32 %v1147, %v1382
      %v1384 = vpop.f32.mrb[0].mxu0
      %v1385 = vpop.f32.mrb[0].mxu0
      %v1386 = vadd.f32 %v1150, %v1385
      %v1387 = vpop.f32.mrb[0].mxu0
      %1388 = vmatprep.mubr.bf16.mxu0 %v1000
      %1389 = vmatmul.mubr.bf16.gmra.mrb[0].mxu0 %v807
      %v1390 = vpop.f32.mrb[0].mxu0
      %v1391 = vadd.f32 %v1155, %v1390
      %v1392 = vpop.f32.mrb[0].mxu0
      %v1393 = vpop.f32.mrb[0].mxu0
      %v1394 = vadd.f32 %v1158, %v1393
      %v1395 = vpop.f32.mrb[0].mxu0
      %1396 = vmatprep.mubr.bf16.mxu0 %v1003
      %1397 = vmatmul.mubr.bf16.gmra.mrb[0].mxu0 %v810
      %v1398 = vpop.f32.mrb[0].mxu0
      %v1399 = vadd.f32 %v1163, %v1398
      %v1400 = vpop.f32.mrb[0].mxu0
      %v1401 = vpop.f32.mrb[0].mxu0
      %v1402 = vadd.f32 %v1166, %v1401
      %v1403 = vpop.f32.mrb[0].mxu0
      %1404 = vdwg.mxu0
      %v1407 = vunpack.c.l.b16 %v358
      %v1408 = vunpack.c.l.b16 %v359
      %v1409 = vpack.c.b16 %v1408, %v1407
      %v1411 = vunpack.c.l.b16 %v360
      %v1412 = vpack.c.b16 %v1411, %v1411
      %v1414 = vshrl.u32 %v1409, 16
      %v1416 = vshll.u32 %v1409, 16
      %v1418 = vrot.slane %v1416, 1
      %v1419 = vor.u32 %v1414, %v1418
      %v1421 = vshll.u32 %v1412, 16
      %v1423 = vrot.slane %v1421, 1
      %v1424 = vsel %vm489, %v1419, %v1423
      %1425 = vrot.lane.b32.xlu0 %v1424, 64
      %v1426 = vpop.permute.xlu0 %1425
      %v1427 = vrot.slane %v1409, 1
      %v1428 = vrot.slane %v1412, 1
      %v1429 = vsel %vm714, %v1427, %v1428
      %v1431 = vsel %vm763, %v1409, %v1426
      %v1433 = vld [vmem:[%s1 + $0xc0] sm:$0xf]
      %v1434 = vld [vmem:[%s1 + $0xc4] sm:$0xf]
      %v1435 = vld [vmem:[%s1 + $0xc8] sm:$0xf]
      %v1436 = vld [vmem:[%s1 + $0xcc] sm:$0xf]
      %v1437 = vld [vmem:[%s1 + $0xd0] sm:$0xf]
      %v1438 = vld [vmem:[%s1 + $0xd4] sm:$0xf]
      %v1439 = vld [vmem:[%s1 + $0xd8] sm:$0xf]
      %v1440 = vld [vmem:[%s1 + $0xdc] sm:$0xf]
      %v1441 = vld [vmem:[%s1 + $0xe0] sm:$0xf]
      %v1442 = vld [vmem:[%s1 + $0xe4] sm:$0xf]
      %v1443 = vld [vmem:[%s1 + $0xe8] sm:$0xf]
      %v1444 = vld [vmem:[%s1 + $0xec] sm:$0xf]
      %v1445 = vld [vmem:[%s1 + $0xf0] sm:$0xf]
      %v1446 = vld [vmem:[%s1 + $0xf4] sm:$0xf]
      %v1447 = vld [vmem:[%s1 + $0xf8] sm:$0xf]
      %v1448 = vld [vmem:[%s1 + $0xfc] sm:$0xf]
      %v1449 = vld [vmem:[%s1 + $0x100] sm:$0xf]
      %v1450 = vld [vmem:[%s1 + $0x104] sm:$0xf]
      %v1451 = vld [vmem:[%s1 + $0x108] sm:$0xf]
      %v1452 = vld [vmem:[%s1 + $0x10c] sm:$0xf]
      %v1453 = vld [vmem:[%s1 + $0x110] sm:$0xf]
      %v1454 = vld [vmem:[%s1 + $0x114] sm:$0xf]
      %v1455 = vld [vmem:[%s1 + $0x118] sm:$0xf]
      %v1456 = vld [vmem:[%s1 + $0x11c] sm:$0xf]
      %v1481 = vunpack.c.l.b16 %v1433
      %v1482 = vunpack.c.l.b16 %v1434
      %v1483 = vunpack.c.l.b16 %v1435
      %v1484 = vunpack.c.l.b16 %v1436
      %v1485 = vunpack.c.l.b16 %v1437
      %v1486 = vunpack.c.l.b16 %v1438
      %v1487 = vunpack.c.l.b16 %v1439
      %v1488 = vunpack.c.l.b16 %v1440
      %v1489 = vunpack.c.l.b16 %v1441
      %v1490 = vunpack.c.l.b16 %v1442
      %v1491 = vunpack.c.l.b16 %v1443
      %v1492 = vunpack.c.l.b16 %v1444
      %v1493 = vunpack.c.l.b16 %v1445
      %v1494 = vunpack.c.l.b16 %v1446
      %v1495 = vunpack.c.l.b16 %v1447
      %v1496 = vunpack.c.l.b16 %v1448
      %v1497 = vunpack.c.l.b16 %v1449
      %v1498 = vunpack.c.l.b16 %v1450
      %v1499 = vunpack.c.l.b16 %v1451
      %v1500 = vunpack.c.l.b16 %v1452
      %v1501 = vunpack.c.l.b16 %v1453
      %v1502 = vunpack.c.l.b16 %v1454
      %v1503 = vunpack.c.l.b16 %v1455
      %v1504 = vunpack.c.l.b16 %v1456
      %v1505 = vpack.c.b16 %v1482, %v1481
      %v1506 = vpack.c.b16 %v1484, %v1483
      %v1507 = vpack.c.b16 %v1486, %v1485
      %v1508 = vpack.c.b16 %v1488, %v1487
      %v1509 = vpack.c.b16 %v1490, %v1489
      %v1510 = vpack.c.b16 %v1492, %v1491
      %v1511 = vpack.c.b16 %v1494, %v1493
      %v1512 = vpack.c.b16 %v1496, %v1495
      %v1513 = vpack.c.b16 %v1498, %v1497
      %v1514 = vpack.c.b16 %v1500, %v1499
      %v1515 = vpack.c.b16 %v1502, %v1501
      %v1516 = vpack.c.b16 %v1504, %v1503
      %v1530 = vsel %vm763, %v1429, 0
      %1532 = vmatprep.subr.bf16.mxu0 0
      %1533 = vmatpush1.bf16.msra.mxu0 %v1505
      %1534 = vmatprep.subr.bf16.mxu0 0
      %1535 = vmatpush1.bf16.msra.mxu0 %v1506
      %1536 = vmatprep.subr.bf16.mxu0 0
      %1537 = vmatpush1.bf16.msra.mxu0 %v1507
      %1538 = vmatprep.subr.bf16.mxu0 0
      %1539 = vmatpush1.bf16.msra.mxu0 %v1508
      %1540 = vmatprep.subr.bf16.mxu0 0
      %1541 = vmatpush1.bf16.msra.mxu0 %v1509
      %1542 = vmatprep.subr.bf16.mxu0 0
      %1543 = vmatpush1.bf16.msra.mxu0 %v1510
      %1544 = vmatprep.subr.bf16.mxu0 0
      %1545 = vmatpush1.bf16.msra.mxu0 %v1511
      %1546 = vmatprep.subr.bf16.mxu0 0
      %1547 = vmatpush1.bf16.msra.mxu0 %v1512
      %1548 = vmatprep.subr.bf16.mxu0 0
      %1549 = vmatpush1.bf16.msra.mxu0 %v1513
      %1550 = vmatprep.subr.bf16.mxu0 0
      %1551 = vmatpush1.bf16.msra.mxu0 %v1514
      %1552 = vmatprep.subr.bf16.mxu0 0
      %1553 = vmatpush1.bf16.msra.mxu0 %v1515
      %1554 = vmatprep.subr.bf16.mxu0 0
      %1555 = vmatpush1.bf16.msra.mxu0 %v1516
      %1556 = vmatprep.subr.bf16.mxu0 0
      %1557 = vmatpush1.bf16.msra.mxu0 0
      %1558 = vmatprep.subr.bf16.mxu0 0
      %1559 = vmatpush1.bf16.msra.mxu0 0
      %1560 = vmatprep.subr.bf16.mxu0 0
      %1561 = vmatpush1.bf16.msra.mxu0 0
      %1562 = vmatprep.subr.bf16.mxu0 0
      %1563 = vmatpush1.bf16.msra.mxu0 0
      %1564 = vmatprep.mubr.bf16.mxu0 %v964
      %1565 = vmatmul.mubr.bf16.gmra.mrb[0].mxu0 %v771
      %v1566 = vpop.f32.mrb[0].mxu0
      %v1567 = vadd.f32 0.0, %v1566
      %v1568 = vpop.f32.mrb[0].mxu0
      %v1569 = vpop.f32.mrb[0].mxu0
      %v1570 = vadd.f32 0.0, %v1569
      %v1571 = vpop.f32.mrb[0].mxu0
      %1572 = vmatprep.mubr.bf16.mxu0 %v967
      %1573 = vmatmul.mubr.bf16.gmra.mrb[0].mxu0 %v774
      %v1574 = vpop.f32.mrb[0].mxu0
      %v1575 = vadd.f32 0.0, %v1574
      %v1576 = vpop.f32.mrb[0].mxu0
      %v1577 = vpop.f32.mrb[0].mxu0
      %v1578 = vadd.f32 0.0, %v1577
      %v1579 = vpop.f32.mrb[0].mxu0
      %1580 = vmatprep.mubr.bf16.mxu0 %v970
      %1581 = vmatmul.mubr.bf16.gmra.mrb[0].mxu0 %v777
      %v1582 = vpop.f32.mrb[0].mxu0
      %v1583 = vadd.f32 0.0, %v1582
      %v1584 = vpop.f32.mrb[0].mxu0
      %v1585 = vpop.f32.mrb[0].mxu0
      %v1586 = vadd.f32 0.0, %v1585
      %v1587 = vpop.f32.mrb[0].mxu0
      %1588 = vmatprep.mubr.bf16.mxu0 %v973
      %1589 = vmatmul.mubr.bf16.gmra.mrb[0].mxu0 %v780
      %v1590 = vpop.f32.mrb[0].mxu0
      %v1591 = vadd.f32 0.0, %v1590
      %v1592 = vpop.f32.mrb[0].mxu0
      %v1593 = vpop.f32.mrb[0].mxu0
      %v1594 = vadd.f32 0.0, %v1593
      %v1595 = vpop.f32.mrb[0].mxu0
      %1596 = vmatprep.mubr.bf16.mxu0 %v976
      %1597 = vmatmul.mubr.bf16.gmra.mrb[0].mxu0 %v783
      %v1598 = vpop.f32.mrb[0].mxu0
      %v1599 = vadd.f32 0.0, %v1598
      %v1600 = vpop.f32.mrb[0].mxu0
      %v1601 = vpop.f32.mrb[0].mxu0
      %v1602 = vadd.f32 0.0, %v1601
      %v1603 = vpop.f32.mrb[0].mxu0
      %1604 = vmatprep.mubr.bf16.mxu0 %v979
      %1605 = vmatmul.mubr.bf16.gmra.mrb[0].mxu0 %v786
      %v1606 = vpop.f32.mrb[0].mxu0
      %v1607 = vadd.f32 0.0, %v1606
      %v1608 = vpop.f32.mrb[0].mxu0
      %v1609 = vpop.f32.mrb[0].mxu0
      %v1610 = vadd.f32 0.0, %v1609
      %v1611 = vpop.f32.mrb[0].mxu0
      %1612 = vmatprep.mubr.bf16.mxu0 %v982
      %1613 = vmatmul.mubr.bf16.gmra.mrb[0].mxu0 %v789
      %v1614 = vpop.f32.mrb[0].mxu0
      %v1615 = vadd.f32 0.0, %v1614
      %v1616 = vpop.f32.mrb[0].mxu0
      %v1617 = vpop.f32.mrb[0].mxu0
      %v1618 = vadd.f32 0.0, %v1617
      %v1619 = vpop.f32.mrb[0].mxu0
      %1620 = vmatprep.mubr.bf16.mxu0 %v985
      %1621 = vmatmul.mubr.bf16.gmra.mrb[0].mxu0 %v792
      %v1622 = vpop.f32.mrb[0].mxu0
      %v1623 = vadd.f32 0.0, %v1622
      %v1624 = vpop.f32.mrb[0].mxu0
      %v1625 = vpop.f32.mrb[0].mxu0
      %v1626 = vadd.f32 0.0, %v1625
      %v1627 = vpop.f32.mrb[0].mxu0
      %1628 = vmatprep.mubr.bf16.mxu0 %v988
      %1629 = vmatmul.mubr.bf16.gmra.mrb[0].mxu0 %v795
      %v1630 = vpop.f32.mrb[0].mxu0
      %v1631 = vadd.f32 0.0, %v1630
      %v1632 = vpop.f32.mrb[0].mxu0
      %v1633 = vpop.f32.mrb[0].mxu0
      %v1634 = vadd.f32 0.0, %v1633
      %v1635 = vpop.f32.mrb[0].mxu0
      %1636 = vmatprep.mubr.bf16.mxu0 %v991
      %1637 = vmatmul.mubr.bf16.gmra.mrb[0].mxu0 %v798
      %v1638 = vpop.f32.mrb[0].mxu0
      %v1639 = vadd.f32 0.0, %v1638
      %v1640 = vpop.f32.mrb[0].mxu0
      %v1641 = vpop.f32.mrb[0].mxu0
      %v1642 = vadd.f32 0.0, %v1641
      %v1643 = vpop.f32.mrb[0].mxu0
      %1644 = vmatprep.mubr.bf16.mxu0 %v994
      %1645 = vmatmul.mubr.bf16.gmra.mrb[0].mxu0 %v801
      %v1646 = vpop.f32.mrb[0].mxu0
      %v1647 = vadd.f32 0.0, %v1646
      %v1648 = vpop.f32.mrb[0].mxu0
      %v1649 = vpop.f32.mrb[0].mxu0
      %v1650 = vadd.f32 0.0, %v1649
      %v1651 = vpop.f32.mrb[0].mxu0
      %1652 = vmatprep.mubr.bf16.mxu0 %v997
      %1653 = vmatmul.mubr.bf16.gmra.mrb[0].mxu0 %v804
      %v1654 = vpop.f32.mrb[0].mxu0
      %v1655 = vadd.f32 0.0, %v1654
      %v1656 = vpop.f32.mrb[0].mxu0
      %v1657 = vpop.f32.mrb[0].mxu0
      %v1658 = vadd.f32 0.0, %v1657
      %v1659 = vpop.f32.mrb[0].mxu0
      %1660 = vmatprep.mubr.bf16.mxu0 %v1000
      %1661 = vmatmul.mubr.bf16.gmra.mrb[0].mxu0 %v807
      %v1662 = vpop.f32.mrb[0].mxu0
      %v1663 = vadd.f32 0.0, %v1662
      %v1664 = vpop.f32.mrb[0].mxu0
      %v1665 = vpop.f32.mrb[0].mxu0
      %v1666 = vadd.f32 0.0, %v1665
      %v1667 = vpop.f32.mrb[0].mxu0
      %1668 = vmatprep.mubr.bf16.mxu0 %v1003
      %1669 = vmatmul.mubr.bf16.gmra.mrb[0].mxu0 %v810
      %v1670 = vpop.f32.mrb[0].mxu0
      %v1671 = vadd.f32 0.0, %v1670
      %v1672 = vpop.f32.mrb[0].mxu0
      %v1673 = vpop.f32.mrb[0].mxu0
      %v1674 = vadd.f32 0.0, %v1673
      %v1675 = vpop.f32.mrb[0].mxu0
      %1676 = vmatprep.mubr.bf16.mxu0 %v1006
      %1677 = vmatmul.mubr.bf16.gmra.mrb[0].mxu0 %v862
      %v1678 = vpop.f32.mrb[0].mxu0
      %v1679 = vadd.f32 0.0, %v1678
      %v1680 = vpop.f32.mrb[0].mxu0
      %v1681 = vpop.f32.mrb[0].mxu0
      %v1682 = vadd.f32 0.0, %v1681
      %v1683 = vpop.f32.mrb[0].mxu0
      %1684 = vmatprep.mubr.bf16.mxu0 %v1530
      %1685 = vmatmul.mubr.bf16.gmra.mrb[0].mxu0 %v1431
      %v1686 = vpop.f32.mrb[0].mxu0
      %v1687 = vadd.f32 0.0, %v1686
      %v1688 = vpop.f32.mrb[0].mxu0
      %v1689 = vpop.f32.mrb[0].mxu0
      %v1690 = vadd.f32 0.0, %v1689
      %v1691 = vpop.f32.mrb[0].mxu0
      %1692 = vdwg.mxu0
      %v1693 = vadd.f32 %v1279, %v1567
      %v1694 = vadd.f32 %v1282, %v1570
      %v1695 = vadd.f32 %v1287, %v1575
      %v1696 = vadd.f32 %v1290, %v1578
      %v1697 = vadd.f32 %v1295, %v1583
      %v1698 = vadd.f32 %v1298, %v1586
      %v1699 = vadd.f32 %v1303, %v1591
      %v1700 = vadd.f32 %v1306, %v1594
      %v1701 = vadd.f32 %v1311, %v1599
      %v1702 = vadd.f32 %v1314, %v1602
      %v1703 = vadd.f32 %v1319, %v1607
      %v1704 = vadd.f32 %v1322, %v1610
      %v1705 = vadd.f32 %v1327, %v1615
      %v1706 = vadd.f32 %v1330, %v1618
      %v1707 = vadd.f32 %v1335, %v1623
      %v1708 = vadd.f32 %v1338, %v1626
      %v1709 = vadd.f32 %v1343, %v1631
      %v1710 = vadd.f32 %v1346, %v1634
      %v1711 = vadd.f32 %v1351, %v1639
      %v1712 = vadd.f32 %v1354, %v1642
      %v1713 = vadd.f32 %v1359, %v1647
      %v1714 = vadd.f32 %v1362, %v1650
      %v1715 = vadd.f32 %v1367, %v1655
      %v1716 = vadd.f32 %v1370, %v1658
      %v1717 = vadd.f32 %v1375, %v1663
      %v1718 = vadd.f32 %v1378, %v1666
      %v1719 = vadd.f32 %v1383, %v1671
      %v1720 = vadd.f32 %v1386, %v1674
      %v1721 = vadd.f32 %v1391, %v1679
      %v1722 = vadd.f32 %v1394, %v1682
      %v1723 = vadd.f32 %v1399, %v1687
      %v1724 = vadd.f32 %v1402, %v1690
      %v1725 = vld [vmem:[%s2] sm:$0x1]
      %v1727 = vlaneseq
      %v1728 = vshrl.u32 %v1727, 7
      %v1729 = vsub.s32 0, %v1728
      %v1730 = vrot.slane %v1725, %v1729
      %v1732 = vadd.f32 %v1693, %v1730
      %v1733 = vadd.f32 %v1694, %v1730
      %v1734 = vadd.f32 %v1695, %v1730
      %v1735 = vadd.f32 %v1696, %v1730
      %v1736 = vadd.f32 %v1697, %v1730
      %v1737 = vadd.f32 %v1698, %v1730
      %v1738 = vadd.f32 %v1699, %v1730
      %v1739 = vadd.f32 %v1700, %v1730
      %v1740 = vadd.f32 %v1701, %v1730
      %v1741 = vadd.f32 %v1702, %v1730
      %v1742 = vadd.f32 %v1703, %v1730
      %v1743 = vadd.f32 %v1704, %v1730
      %v1744 = vadd.f32 %v1705, %v1730
      %v1745 = vadd.f32 %v1706, %v1730
      %v1746 = vadd.f32 %v1707, %v1730
      %v1747 = vadd.f32 %v1708, %v1730
      %v1748 = vadd.f32 %v1709, %v1730
      %v1749 = vadd.f32 %v1710, %v1730
      %v1750 = vadd.f32 %v1711, %v1730
      %v1751 = vadd.f32 %v1712, %v1730
      %v1752 = vadd.f32 %v1713, %v1730
      %v1753 = vadd.f32 %v1714, %v1730
      %v1754 = vadd.f32 %v1715, %v1730
      %v1755 = vadd.f32 %v1716, %v1730
      %v1756 = vadd.f32 %v1717, %v1730
      %v1757 = vadd.f32 %v1718, %v1730
      %v1758 = vadd.f32 %v1719, %v1730
      %v1759 = vadd.f32 %v1720, %v1730
      %v1760 = vadd.f32 %v1721, %v1730
      %v1761 = vadd.f32 %v1722, %v1730
      %v1762 = vadd.f32 %v1723, %v1730
      %v1763 = vadd.f32 %v1724, %v1730
      %v1764 = vmax.f32 %v1732, 0.0
      %v1765 = vmax.f32 %v1733, 0.0
      %v1766 = vmax.f32 %v1734, 0.0
      %v1767 = vmax.f32 %v1735, 0.0
      %v1768 = vmax.f32 %v1736, 0.0
      %v1769 = vmax.f32 %v1737, 0.0
      %v1770 = vmax.f32 %v1738, 0.0
      %v1771 = vmax.f32 %v1739, 0.0
      %v1772 = vmax.f32 %v1740, 0.0
      %v1773 = vmax.f32 %v1741, 0.0
      %v1774 = vmax.f32 %v1742, 0.0
      %v1775 = vmax.f32 %v1743, 0.0
      %v1776 = vmax.f32 %v1744, 0.0
      %v1777 = vmax.f32 %v1745, 0.0
      %v1778 = vmax.f32 %v1746, 0.0
      %v1779 = vmax.f32 %v1747, 0.0
      %v1780 = vmax.f32 %v1748, 0.0
      %v1781 = vmax.f32 %v1749, 0.0
      %v1782 = vmax.f32 %v1750, 0.0
      %v1783 = vmax.f32 %v1751, 0.0
      %v1784 = vmax.f32 %v1752, 0.0
      %v1785 = vmax.f32 %v1753, 0.0
      %v1786 = vmax.f32 %v1754, 0.0
      %v1787 = vmax.f32 %v1755, 0.0
      %v1788 = vmax.f32 %v1756, 0.0
      %v1789 = vmax.f32 %v1757, 0.0
      %v1790 = vmax.f32 %v1758, 0.0
      %v1791 = vmax.f32 %v1759, 0.0
      %v1792 = vmax.f32 %v1760, 0.0
      %v1793 = vmax.f32 %v1761, 0.0
      %v1794 = vmax.f32 %v1762, 0.0
      %v1795 = vmax.f32 %v1763, 0.0
      %v1796 = vpack.c.bf16 %v1765, %v1764
      %v1797 = vpack.c.bf16 %v1767, %v1766
      %v1798 = vpack.c.bf16 %v1769, %v1768
      %v1799 = vpack.c.bf16 %v1771, %v1770
      %v1800 = vpack.c.bf16 %v1773, %v1772
      %v1801 = vpack.c.bf16 %v1775, %v1774
      %v1802 = vpack.c.bf16 %v1777, %v1776
      %v1803 = vpack.c.bf16 %v1779, %v1778
      %v1804 = vpack.c.bf16 %v1781, %v1780
      %v1805 = vpack.c.bf16 %v1783, %v1782
      %v1806 = vpack.c.bf16 %v1785, %v1784
      %v1807 = vpack.c.bf16 %v1787, %v1786
      %v1808 = vpack.c.bf16 %v1789, %v1788
      %v1809 = vpack.c.bf16 %v1791, %v1790
      %v1810 = vpack.c.bf16 %v1793, %v1792
      %v1811 = vpack.c.bf16 %v1795, %v1794
      %v1812 = vld [vmem:[%s3] sm:$0xf]
      %v1813 = vld [vmem:[%s3 + $0x4] sm:$0xf]
      %v1814 = vld [vmem:[%s3 + $0x8] sm:$0xf]
      %v1815 = vld [vmem:[%s3 + $0xc] sm:$0xf]
      %v1816 = vld [vmem:[%s3 + $0x10] sm:$0xf]
      %v1817 = vld [vmem:[%s3 + $0x14] sm:$0xf]
      %v1818 = vld [vmem:[%s3 + $0x18] sm:$0xf]
      %v1819 = vld [vmem:[%s3 + $0x1c] sm:$0xf]
      %v1820 = vld [vmem:[%s3 + $0x20] sm:$0xf]
      %v1821 = vld [vmem:[%s3 + $0x24] sm:$0xf]
      %v1822 = vld [vmem:[%s3 + $0x28] sm:$0xf]
      %v1823 = vld [vmem:[%s3 + $0x2c] sm:$0xf]
      %v1824 = vld [vmem:[%s3 + $0x30] sm:$0xf]
      %v1825 = vld [vmem:[%s3 + $0x34] sm:$0xf]
      %v1826 = vld [vmem:[%s3 + $0x38] sm:$0xf]
      %v1827 = vld [vmem:[%s3 + $0x3c] sm:$0xf]
      %v1828 = vld [vmem:[%s4] sm:$0x1]
      %v1830 = vlaneseq
      %v1831 = vshrl.u32 %v1830, 7
      %v1832 = vsub.s32 0, %v1831
      %v1833 = vrot.slane %v1828, %v1832
      %v1851 = vunpack.c.l.b16 %v1812
      %v1852 = vunpack.c.l.b16 %v1813
      %v1853 = vunpack.c.l.b16 %v1814
      %v1854 = vunpack.c.l.b16 %v1815
      %v1855 = vunpack.c.l.b16 %v1816
      %v1856 = vunpack.c.l.b16 %v1817
      %v1857 = vunpack.c.l.b16 %v1818
      %v1858 = vunpack.c.l.b16 %v1819
      %v1859 = vunpack.c.l.b16 %v1820
      %v1860 = vunpack.c.l.b16 %v1821
      %v1861 = vunpack.c.l.b16 %v1822
      %v1862 = vunpack.c.l.b16 %v1823
      %v1863 = vunpack.c.l.b16 %v1824
      %v1864 = vunpack.c.l.b16 %v1825
      %v1865 = vunpack.c.l.b16 %v1826
      %v1866 = vunpack.c.l.b16 %v1827
      %v1867 = vpack.c.b16 %v1852, %v1851
      %v1868 = vpack.c.b16 %v1854, %v1853
      %v1869 = vpack.c.b16 %v1856, %v1855
      %v1870 = vpack.c.b16 %v1858, %v1857
      %v1871 = vpack.c.b16 %v1860, %v1859
      %v1872 = vpack.c.b16 %v1862, %v1861
      %v1873 = vpack.c.b16 %v1864, %v1863
      %v1874 = vpack.c.b16 %v1866, %v1865
      %1883 = vmatprep.subr.bf16.mxu0 0
      %1884 = vmatpush1.bf16.msra.mxu0 %v1867
      %1885 = vmatprep.subr.bf16.mxu0 0
      %1886 = vmatpush1.bf16.msra.mxu0 %v1868
      %1887 = vmatprep.subr.bf16.mxu0 0
      %1888 = vmatpush1.bf16.msra.mxu0 %v1869
      %1889 = vmatprep.subr.bf16.mxu0 0
      %1890 = vmatpush1.bf16.msra.mxu0 %v1870
      %1891 = vmatprep.subr.bf16.mxu0 0
      %1892 = vmatpush1.bf16.msra.mxu0 %v1871
      %1893 = vmatprep.subr.bf16.mxu0 0
      %1894 = vmatpush1.bf16.msra.mxu0 %v1872
      %1895 = vmatprep.subr.bf16.mxu0 0
      %1896 = vmatpush1.bf16.msra.mxu0 %v1873
      %1897 = vmatprep.subr.bf16.mxu0 0
      %1898 = vmatpush1.bf16.msra.mxu0 %v1874
      %1899 = vmatprep.subr.bf16.mxu0 0
      %1900 = vmatpush1.bf16.msra.mxu0 0
      %1901 = vmatprep.subr.bf16.mxu0 0
      %1902 = vmatpush1.bf16.msra.mxu0 0
      %1903 = vmatprep.subr.bf16.mxu0 0
      %1904 = vmatpush1.bf16.msra.mxu0 0
      %1905 = vmatprep.subr.bf16.mxu0 0
      %1906 = vmatpush1.bf16.msra.mxu0 0
      %1907 = vmatprep.subr.bf16.mxu0 0
      %1908 = vmatpush1.bf16.msra.mxu0 0
      %1909 = vmatprep.subr.bf16.mxu0 0
      %1910 = vmatpush1.bf16.msra.mxu0 0
      %1911 = vmatprep.subr.bf16.mxu0 0
      %1912 = vmatpush1.bf16.msra.mxu0 0
      %1913 = vmatprep.subr.bf16.mxu0 0
      %1914 = vmatpush1.bf16.msra.mxu0 0
      %1915 = vmatprep.mubr.bf16.mxu0 0
      %1916 = vmatmul.mubr.bf16.gmra.mrb[0].mxu0 %v1796
      %v1917 = vpop.f32.mrb[0].mxu0
      %v1918 = vadd.f32 %v1833, %v1917
      %v1919 = vpop.f32.mrb[0].mxu0
      %v1920 = vpop.f32.mrb[0].mxu0
      %v1921 = vadd.f32 %v1833, %v1920
      %v1922 = vpop.f32.mrb[0].mxu0
      %1923 = vmatprep.mubr.bf16.mxu0 0
      %1924 = vmatmul.mubr.bf16.gmra.mrb[0].mxu0 %v1797
      %v1925 = vpop.f32.mrb[0].mxu0
      %v1926 = vadd.f32 %v1833, %v1925
      %v1927 = vpop.f32.mrb[0].mxu0
      %v1928 = vpop.f32.mrb[0].mxu0
      %v1929 = vadd.f32 %v1833, %v1928
      %v1930 = vpop.f32.mrb[0].mxu0
      %1931 = vmatprep.mubr.bf16.mxu0 0
      %1932 = vmatmul.mubr.bf16.gmra.mrb[0].mxu0 %v1798
      %v1933 = vpop.f32.mrb[0].mxu0
      %v1934 = vadd.f32 %v1833, %v1933
      %v1935 = vpop.f32.mrb[0].mxu0
      %v1936 = vpop.f32.mrb[0].mxu0
      %v1937 = vadd.f32 %v1833, %v1936
      %v1938 = vpop.f32.mrb[0].mxu0
      %1939 = vmatprep.mubr.bf16.mxu0 0
      %1940 = vmatmul.mubr.bf16.gmra.mrb[0].mxu0 %v1799
      %v1941 = vpop.f32.mrb[0].mxu0
      %v1942 = vadd.f32 %v1833, %v1941
      %v1943 = vpop.f32.mrb[0].mxu0
      %v1944 = vpop.f32.mrb[0].mxu0
      %v1945 = vadd.f32 %v1833, %v1944
      %v1946 = vpop.f32.mrb[0].mxu0
      %1947 = vmatprep.mubr.bf16.mxu0 0
      %1948 = vmatmul.mubr.bf16.gmra.mrb[0].mxu0 %v1800
      %v1949 = vpop.f32.mrb[0].mxu0
      %v1950 = vadd.f32 %v1833, %v1949
      %v1951 = vpop.f32.mrb[0].mxu0
      %v1952 = vpop.f32.mrb[0].mxu0
      %v1953 = vadd.f32 %v1833, %v1952
      %v1954 = vpop.f32.mrb[0].mxu0
      %1955 = vmatprep.mubr.bf16.mxu0 0
      %1956 = vmatmul.mubr.bf16.gmra.mrb[0].mxu0 %v1801
      %v1957 = vpop.f32.mrb[0].mxu0
      %v1958 = vadd.f32 %v1833, %v1957
      %v1959 = vpop.f32.mrb[0].mxu0
      %v1960 = vpop.f32.mrb[0].mxu0
      %v1961 = vadd.f32 %v1833, %v1960
      %v1962 = vpop.f32.mrb[0].mxu0
      %1963 = vmatprep.mubr.bf16.mxu0 0
      %1964 = vmatmul.mubr.bf16.gmra.mrb[0].mxu0 %v1802
      %v1965 = vpop.f32.mrb[0].mxu0
      %v1966 = vadd.f32 %v1833, %v1965
      %v1967 = vpop.f32.mrb[0].mxu0
      %v1968 = vpop.f32.mrb[0].mxu0
      %v1969 = vadd.f32 %v1833, %v1968
      %v1970 = vpop.f32.mrb[0].mxu0
      %1971 = vmatprep.mubr.bf16.mxu0 0
      %1972 = vmatmul.mubr.bf16.gmra.mrb[0].mxu0 %v1803
      %v1973 = vpop.f32.mrb[0].mxu0
      %v1974 = vadd.f32 %v1833, %v1973
      %v1975 = vpop.f32.mrb[0].mxu0
      %v1976 = vpop.f32.mrb[0].mxu0
      %v1977 = vadd.f32 %v1833, %v1976
      %v1978 = vpop.f32.mrb[0].mxu0
      %1979 = vmatprep.mubr.bf16.mxu0 0
      %1980 = vmatmul.mubr.bf16.gmra.mrb[0].mxu0 %v1804
      %v1981 = vpop.f32.mrb[0].mxu0
      %v1982 = vadd.f32 %v1833, %v1981
      %v1983 = vpop.f32.mrb[0].mxu0
      %v1984 = vpop.f32.mrb[0].mxu0
      %v1985 = vadd.f32 %v1833, %v1984
      %v1986 = vpop.f32.mrb[0].mxu0
      %1987 = vmatprep.mubr.bf16.mxu0 0
      %1988 = vmatmul.mubr.bf16.gmra.mrb[0].mxu0 %v1805
      %v1989 = vpop.f32.mrb[0].mxu0
      %v1990 = vadd.f32 %v1833, %v1989
      %v1991 = vpop.f32.mrb[0].mxu0
      %v1992 = vpop.f32.mrb[0].mxu0
      %v1993 = vadd.f32 %v1833, %v1992
      %v1994 = vpop.f32.mrb[0].mxu0
      %1995 = vmatprep.mubr.bf16.mxu0 0
      %1996 = vmatmul.mubr.bf16.gmra.mrb[0].mxu0 %v1806
      %v1997 = vpop.f32.mrb[0].mxu0
      %v1998 = vadd.f32 %v1833, %v1997
      %v1999 = vpop.f32.mrb[0].mxu0
      %v2000 = vpop.f32.mrb[0].mxu0
      %v2001 = vadd.f32 %v1833, %v2000
      %v2002 = vpop.f32.mrb[0].mxu0
      %2003 = vmatprep.mubr.bf16.mxu0 0
      %2004 = vmatmul.mubr.bf16.gmra.mrb[0].mxu0 %v1807
      %v2005 = vpop.f32.mrb[0].mxu0
      %v2006 = vadd.f32 %v1833, %v2005
      %v2007 = vpop.f32.mrb[0].mxu0
      %v2008 = vpop.f32.mrb[0].mxu0
      %v2009 = vadd.f32 %v1833, %v2008
      %v2010 = vpop.f32.mrb[0].mxu0
      %2011 = vmatprep.mubr.bf16.mxu0 0
      %2012 = vmatmul.mubr.bf16.gmra.mrb[0].mxu0 %v1808
      %v2013 = vpop.f32.mrb[0].mxu0
      %v2014 = vadd.f32 %v1833, %v2013
      %v2015 = vpop.f32.mrb[0].mxu0
      %v2016 = vpop.f32.mrb[0].mxu0
      %v2017 = vadd.f32 %v1833, %v2016
      %v2018 = vpop.f32.mrb[0].mxu0
      %2019 = vmatprep.mubr.bf16.mxu0 0
      %2020 = vmatmul.mubr.bf16.gmra.mrb[0].mxu0 %v1809
      %v2021 = vpop.f32.mrb[0].mxu0
      %v2022 = vadd.f32 %v1833, %v2021
      %v2023 = vpop.f32.mrb[0].mxu0
      %v2024 = vpop.f32.mrb[0].mxu0
      %v2025 = vadd.f32 %v1833, %v2024
      %v2026 = vpop.f32.mrb[0].mxu0
      %2027 = vmatprep.mubr.bf16.mxu0 0
      %2028 = vmatmul.mubr.bf16.gmra.mrb[0].mxu0 %v1810
      %v2029 = vpop.f32.mrb[0].mxu0
      %v2030 = vadd.f32 %v1833, %v2029
      %v2031 = vpop.f32.mrb[0].mxu0
      %v2032 = vpop.f32.mrb[0].mxu0
      %v2033 = vadd.f32 %v1833, %v2032
      %v2034 = vpop.f32.mrb[0].mxu0
      %2035 = vmatprep.mubr.bf16.mxu0 0
      %2036 = vmatmul.mubr.bf16.gmra.mrb[0].mxu0 %v1811
      %v2037 = vpop.f32.mrb[0].mxu0
      %v2038 = vadd.f32 %v1833, %v2037
      %v2039 = vpop.f32.mrb[0].mxu0
      %v2040 = vpop.f32.mrb[0].mxu0
      %v2041 = vadd.f32 %v1833, %v2040
      %v2042 = vpop.f32.mrb[0].mxu0
      %2043 = vdwg.mxu0
      %v2044 = vmax.f32 %v1918, 0.0
      %v2045 = vmax.f32 %v1921, 0.0
      %v2046 = vmax.f32 %v1926, 0.0
      %v2047 = vmax.f32 %v1929, 0.0
      %v2048 = vmax.f32 %v1934, 0.0
      %v2049 = vmax.f32 %v1937, 0.0
      %v2050 = vmax.f32 %v1942, 0.0
      %v2051 = vmax.f32 %v1945, 0.0
      %v2052 = vmax.f32 %v1950, 0.0
      %v2053 = vmax.f32 %v1953, 0.0
      %v2054 = vmax.f32 %v1958, 0.0
      %v2055 = vmax.f32 %v1961, 0.0
      %v2056 = vmax.f32 %v1966, 0.0
      %v2057 = vmax.f32 %v1969, 0.0
      %v2058 = vmax.f32 %v1974, 0.0
      %v2059 = vmax.f32 %v1977, 0.0
      %v2060 = vmax.f32 %v1982, 0.0
      %v2061 = vmax.f32 %v1985, 0.0
      %v2062 = vmax.f32 %v1990, 0.0
      %v2063 = vmax.f32 %v1993, 0.0
      %v2064 = vmax.f32 %v1998, 0.0
      %v2065 = vmax.f32 %v2001, 0.0
      %v2066 = vmax.f32 %v2006, 0.0
      %v2067 = vmax.f32 %v2009, 0.0
      %v2068 = vmax.f32 %v2014, 0.0
      %v2069 = vmax.f32 %v2017, 0.0
      %v2070 = vmax.f32 %v2022, 0.0
      %v2071 = vmax.f32 %v2025, 0.0
      %v2072 = vmax.f32 %v2030, 0.0
      %v2073 = vmax.f32 %v2033, 0.0
      %v2074 = vmax.f32 %v2038, 0.0
      %v2075 = vmax.f32 %v2041, 0.0
      %v2076 = vpack.c.bf16 %v2045, %v2044
      %v2077 = vpack.c.bf16 %v2047, %v2046
      %v2078 = vpack.c.bf16 %v2049, %v2048
      %v2079 = vpack.c.bf16 %v2051, %v2050
      %v2080 = vpack.c.bf16 %v2053, %v2052
      %v2081 = vpack.c.bf16 %v2055, %v2054
      %v2082 = vpack.c.bf16 %v2057, %v2056
      %v2083 = vpack.c.bf16 %v2059, %v2058
      %v2084 = vpack.c.bf16 %v2061, %v2060
      %v2085 = vpack.c.bf16 %v2063, %v2062
      %v2086 = vpack.c.bf16 %v2065, %v2064
      %v2087 = vpack.c.bf16 %v2067, %v2066
      %v2088 = vpack.c.bf16 %v2069, %v2068
      %v2089 = vpack.c.bf16 %v2071, %v2070
      %v2090 = vpack.c.bf16 %v2073, %v2072
      %v2091 = vpack.c.bf16 %v2075, %v2074
      %v2092 = vld [vmem:[%s5] sm:$0xf]
      %v2093 = vld [vmem:[%s5 + $0x4] sm:$0xf]
      %v2094 = vld [vmem:[%s5 + $0x8] sm:$0xf]
      %v2095 = vld [vmem:[%s5 + $0xc] sm:$0xf]
      %v2096 = vld [vmem:[%s5 + $0x10] sm:$0xf]
      %v2097 = vld [vmem:[%s5 + $0x14] sm:$0xf]
      %v2098 = vld [vmem:[%s5 + $0x18] sm:$0xf]
      %v2099 = vld [vmem:[%s5 + $0x1c] sm:$0xf]
      %v2100 = vld [vmem:[%s5 + $0x20] sm:$0xf]
      %v2101 = vld [vmem:[%s5 + $0x24] sm:$0xf]
      %v2102 = vld [vmem:[%s5 + $0x28] sm:$0xf]
      %v2103 = vld [vmem:[%s5 + $0x2c] sm:$0xf]
      %v2104 = vld [vmem:[%s5 + $0x30] sm:$0xf]
      %v2105 = vld [vmem:[%s5 + $0x34] sm:$0xf]
      %v2106 = vld [vmem:[%s5 + $0x38] sm:$0xf]
      %v2107 = vld [vmem:[%s5 + $0x3c] sm:$0xf]
      %v2108 = vld [vmem:[%s6] sm:$0x1]
      %v2110 = vlaneseq
      %v2111 = vshrl.u32 %v2110, 7
      %v2112 = vsub.s32 0, %v2111
      %v2113 = vrot.slane %v2108, %v2112
      %v2131 = vunpack.c.l.b16 %v2092
      %v2132 = vunpack.c.l.b16 %v2093
      %v2133 = vunpack.c.l.b16 %v2094
      %v2134 = vunpack.c.l.b16 %v2095
      %v2135 = vunpack.c.l.b16 %v2096
      %v2136 = vunpack.c.l.b16 %v2097
      %v2137 = vunpack.c.l.b16 %v2098
      %v2138 = vunpack.c.l.b16 %v2099
      %v2139 = vunpack.c.l.b16 %v2100
      %v2140 = vunpack.c.l.b16 %v2101
      %v2141 = vunpack.c.l.b16 %v2102
      %v2142 = vunpack.c.l.b16 %v2103
      %v2143 = vunpack.c.l.b16 %v2104
      %v2144 = vunpack.c.l.b16 %v2105
      %v2145 = vunpack.c.l.b16 %v2106
      %v2146 = vunpack.c.l.b16 %v2107
      %v2147 = vpack.c.b16 %v2132, %v2131
      %v2148 = vpack.c.b16 %v2134, %v2133
      %v2149 = vpack.c.b16 %v2136, %v2135
      %v2150 = vpack.c.b16 %v2138, %v2137
      %v2151 = vpack.c.b16 %v2140, %v2139
      %v2152 = vpack.c.b16 %v2142, %v2141
      %v2153 = vpack.c.b16 %v2144, %v2143
      %v2154 = vpack.c.b16 %v2146, %v2145
      %2163 = vmatprep.subr.bf16.mxu0 0
      %2164 = vmatpush1.bf16.msra.mxu0 %v2147
      %2165 = vmatprep.subr.bf16.mxu0 0
      %2166 = vmatpush1.bf16.msra.mxu0 %v2148
      %2167 = vmatprep.subr.bf16.mxu0 0
      %2168 = vmatpush1.bf16.msra.mxu0 %v2149
      %2169 = vmatprep.subr.bf16.mxu0 0
      %2170 = vmatpush1.bf16.msra.mxu0 %v2150
      %2171 = vmatprep.subr.bf16.mxu0 0
      %2172 = vmatpush1.bf16.msra.mxu0 %v2151
      %2173 = vmatprep.subr.bf16.mxu0 0
      %2174 = vmatpush1.bf16.msra.mxu0 %v2152
      %2175 = vmatprep.subr.bf16.mxu0 0
      %2176 = vmatpush1.bf16.msra.mxu0 %v2153
      %2177 = vmatprep.subr.bf16.mxu0 0
      %2178 = vmatpush1.bf16.msra.mxu0 %v2154
      %2179 = vmatprep.subr.bf16.mxu0 0
      %2180 = vmatpush1.bf16.msra.mxu0 0
      %2181 = vmatprep.subr.bf16.mxu0 0
      %2182 = vmatpush1.bf16.msra.mxu0 0
      %2183 = vmatprep.subr.bf16.mxu0 0
      %2184 = vmatpush1.bf16.msra.mxu0 0
      %2185 = vmatprep.subr.bf16.mxu0 0
      %2186 = vmatpush1.bf16.msra.mxu0 0
      %2187 = vmatprep.subr.bf16.mxu0 0
      %2188 = vmatpush1.bf16.msra.mxu0 0
      %2189 = vmatprep.subr.bf16.mxu0 0
      %2190 = vmatpush1.bf16.msra.mxu0 0
      %2191 = vmatprep.subr.bf16.mxu0 0
      %2192 = vmatpush1.bf16.msra.mxu0 0
      %2193 = vmatprep.subr.bf16.mxu0 0
      %2194 = vmatpush1.bf16.msra.mxu0 0
      %2195 = vmatprep.mubr.bf16.mxu0 0
      %2196 = vmatmul.mubr.bf16.gmra.mrb[0].mxu0 %v2076
      %v2197 = vpop.f32.mrb[0].mxu0
      %v2198 = vadd.f32 %v2113, %v2197
      %v2199 = vpop.f32.mrb[0].mxu0
      %v2200 = vpop.f32.mrb[0].mxu0
      %v2201 = vadd.f32 %v2113, %v2200
      %v2202 = vpop.f32.mrb[0].mxu0
      %2203 = vmatprep.mubr.bf16.mxu0 0
      %2204 = vmatmul.mubr.bf16.gmra.mrb[0].mxu0 %v2077
      %v2205 = vpop.f32.mrb[0].mxu0
      %v2206 = vadd.f32 %v2113, %v2205
      %v2207 = vpop.f32.mrb[0].mxu0
      %v2208 = vpop.f32.mrb[0].mxu0
      %v2209 = vadd.f32 %v2113, %v2208
      %v2210 = vpop.f32.mrb[0].mxu0
      %2211 = vmatprep.mubr.bf16.mxu0 0
      %2212 = vmatmul.mubr.bf16.gmra.mrb[0].mxu0 %v2078
      %v2213 = vpop.f32.mrb[0].mxu0
      %v2214 = vadd.f32 %v2113, %v2213
      %v2215 = vpop.f32.mrb[0].mxu0
      %v2216 = vpop.f32.mrb[0].mxu0
      %v2217 = vadd.f32 %v2113, %v2216
      %v2218 = vpop.f32.mrb[0].mxu0
      %2219 = vmatprep.mubr.bf16.mxu0 0
      %2220 = vmatmul.mubr.bf16.gmra.mrb[0].mxu0 %v2079
      %v2221 = vpop.f32.mrb[0].mxu0
      %v2222 = vadd.f32 %v2113, %v2221
      %v2223 = vpop.f32.mrb[0].mxu0
      %v2224 = vpop.f32.mrb[0].mxu0
      %v2225 = vadd.f32 %v2113, %v2224
      %v2226 = vpop.f32.mrb[0].mxu0
      %2227 = vmatprep.mubr.bf16.mxu0 0
      %2228 = vmatmul.mubr.bf16.gmra.mrb[0].mxu0 %v2080
      %v2229 = vpop.f32.mrb[0].mxu0
      %v2230 = vadd.f32 %v2113, %v2229
      %v2231 = vpop.f32.mrb[0].mxu0
      %v2232 = vpop.f32.mrb[0].mxu0
      %v2233 = vadd.f32 %v2113, %v2232
      %v2234 = vpop.f32.mrb[0].mxu0
      %2235 = vmatprep.mubr.bf16.mxu0 0
      %2236 = vmatmul.mubr.bf16.gmra.mrb[0].mxu0 %v2081
      %v2237 = vpop.f32.mrb[0].mxu0
      %v2238 = vadd.f32 %v2113, %v2237
      %v2239 = vpop.f32.mrb[0].mxu0
      %v2240 = vpop.f32.mrb[0].mxu0
      %v2241 = vadd.f32 %v2113, %v2240
      %v2242 = vpop.f32.mrb[0].mxu0
      %2243 = vmatprep.mubr.bf16.mxu0 0
      %2244 = vmatmul.mubr.bf16.gmra.mrb[0].mxu0 %v2082
      %v2245 = vpop.f32.mrb[0].mxu0
      %v2246 = vadd.f32 %v2113, %v2245
      %v2247 = vpop.f32.mrb[0].mxu0
      %v2248 = vpop.f32.mrb[0].mxu0
      %v2249 = vadd.f32 %v2113, %v2248
      %v2250 = vpop.f32.mrb[0].mxu0
      %2251 = vmatprep.mubr.bf16.mxu0 0
      %2252 = vmatmul.mubr.bf16.gmra.mrb[0].mxu0 %v2083
      %v2253 = vpop.f32.mrb[0].mxu0
      %v2254 = vadd.f32 %v2113, %v2253
      %v2255 = vpop.f32.mrb[0].mxu0
      %v2256 = vpop.f32.mrb[0].mxu0
      %v2257 = vadd.f32 %v2113, %v2256
      %v2258 = vpop.f32.mrb[0].mxu0
      %2259 = vmatprep.mubr.bf16.mxu0 0
      %2260 = vmatmul.mubr.bf16.gmra.mrb[0].mxu0 %v2084
      %v2261 = vpop.f32.mrb[0].mxu0
      %v2262 = vadd.f32 %v2113, %v2261
      %v2263 = vpop.f32.mrb[0].mxu0
      %v2264 = vpop.f32.mrb[0].mxu0
      %v2265 = vadd.f32 %v2113, %v2264
      %v2266 = vpop.f32.mrb[0].mxu0
      %2267 = vmatprep.mubr.bf16.mxu0 0
      %2268 = vmatmul.mubr.bf16.gmra.mrb[0].mxu0 %v2085
      %v2269 = vpop.f32.mrb[0].mxu0
      %v2270 = vadd.f32 %v2113, %v2269
      %v2271 = vpop.f32.mrb[0].mxu0
      %v2272 = vpop.f32.mrb[0].mxu0
      %v2273 = vadd.f32 %v2113, %v2272
      %v2274 = vpop.f32.mrb[0].mxu0
      %2275 = vmatprep.mubr.bf16.mxu0 0
      %2276 = vmatmul.mubr.bf16.gmra.mrb[0].mxu0 %v2086
      %v2277 = vpop.f32.mrb[0].mxu0
      %v2278 = vadd.f32 %v2113, %v2277
      %v2279 = vpop.f32.mrb[0].mxu0
      %v2280 = vpop.f32.mrb[0].mxu0
      %v2281 = vadd.f32 %v2113, %v2280
      %v2282 = vpop.f32.mrb[0].mxu0
      %2283 = vmatprep.mubr.bf16.mxu0 0
      %2284 = vmatmul.mubr.bf16.gmra.mrb[0].mxu0 %v2087
      %v2285 = vpop.f32.mrb[0].mxu0
      %v2286 = vadd.f32 %v2113, %v2285
      %v2287 = vpop.f32.mrb[0].mxu0
      %v2288 = vpop.f32.mrb[0].mxu0
      %v2289 = vadd.f32 %v2113, %v2288
      %v2290 = vpop.f32.mrb[0].mxu0
      %2291 = vmatprep.mubr.bf16.mxu0 0
      %2292 = vmatmul.mubr.bf16.gmra.mrb[0].mxu0 %v2088
      %v2293 = vpop.f32.mrb[0].mxu0
      %v2294 = vadd.f32 %v2113, %v2293
      %v2295 = vpop.f32.mrb[0].mxu0
      %v2296 = vpop.f32.mrb[0].mxu0
      %v2297 = vadd.f32 %v2113, %v2296
      %v2298 = vpop.f32.mrb[0].mxu0
      %2299 = vmatprep.mubr.bf16.mxu0 0
      %2300 = vmatmul.mubr.bf16.gmra.mrb[0].mxu0 %v2089
      %v2301 = vpop.f32.mrb[0].mxu0
      %v2302 = vadd.f32 %v2113, %v2301
      %v2303 = vpop.f32.mrb[0].mxu0
      %v2304 = vpop.f32.mrb[0].mxu0
      %v2305 = vadd.f32 %v2113, %v2304
      %v2306 = vpop.f32.mrb[0].mxu0
      %2307 = vmatprep.mubr.bf16.mxu0 0
      %2308 = vmatmul.mubr.bf16.gmra.mrb[0].mxu0 %v2090
      %v2309 = vpop.f32.mrb[0].mxu0
      %v2310 = vadd.f32 %v2113, %v2309
      %v2311 = vpop.f32.mrb[0].mxu0
      %v2312 = vpop.f32.mrb[0].mxu0
      %v2313 = vadd.f32 %v2113, %v2312
      %v2314 = vpop.f32.mrb[0].mxu0
      %2315 = vmatprep.mubr.bf16.mxu0 0
      %2316 = vmatmul.mubr.bf16.gmra.mrb[0].mxu0 %v2091
      %v2317 = vpop.f32.mrb[0].mxu0
      %v2318 = vadd.f32 %v2113, %v2317
      %v2319 = vpop.f32.mrb[0].mxu0
      %v2320 = vpop.f32.mrb[0].mxu0
      %v2321 = vadd.f32 %v2113, %v2320
      %v2322 = vpop.f32.mrb[0].mxu0
      %2323 = vdwg.mxu0
      %v2324 = vmax.f32 %v2198, 0.0
      %v2325 = vmax.f32 %v2201, 0.0
      %v2326 = vmax.f32 %v2206, 0.0
      %v2327 = vmax.f32 %v2209, 0.0
      %v2328 = vmax.f32 %v2214, 0.0
      %v2329 = vmax.f32 %v2217, 0.0
      %v2330 = vmax.f32 %v2222, 0.0
      %v2331 = vmax.f32 %v2225, 0.0
      %v2332 = vmax.f32 %v2230, 0.0
      %v2333 = vmax.f32 %v2233, 0.0
      %v2334 = vmax.f32 %v2238, 0.0
      %v2335 = vmax.f32 %v2241, 0.0
      %v2336 = vmax.f32 %v2246, 0.0
      %v2337 = vmax.f32 %v2249, 0.0
      %v2338 = vmax.f32 %v2254, 0.0
      %v2339 = vmax.f32 %v2257, 0.0
      %v2340 = vmax.f32 %v2262, 0.0
      %v2341 = vmax.f32 %v2265, 0.0
      %v2342 = vmax.f32 %v2270, 0.0
      %v2343 = vmax.f32 %v2273, 0.0
      %v2344 = vmax.f32 %v2278, 0.0
      %v2345 = vmax.f32 %v2281, 0.0
      %v2346 = vmax.f32 %v2286, 0.0
      %v2347 = vmax.f32 %v2289, 0.0
      %v2348 = vmax.f32 %v2294, 0.0
      %v2349 = vmax.f32 %v2297, 0.0
      %v2350 = vmax.f32 %v2302, 0.0
      %v2351 = vmax.f32 %v2305, 0.0
      %v2352 = vmax.f32 %v2310, 0.0
      %v2353 = vmax.f32 %v2313, 0.0
      %v2354 = vmax.f32 %v2318, 0.0
      %v2355 = vmax.f32 %v2321, 0.0
      %2356 = vxpose.xlu0.b32.start [1/16] %v2324, 128
      %2357 = vxpose.xlu0.b32.cont [2/16] %v2325, 128
      %2358 = vxpose.xlu0.b32.cont [3/16] %v2326, 128
      %2359 = vxpose.xlu0.b32.cont [4/16] %v2327, 128
      %2360 = vxpose.xlu0.b32.cont [5/16] %v2328, 128
      %2361 = vxpose.xlu0.b32.cont [6/16] %v2329, 128
      %2362 = vxpose.xlu0.b32.cont [7/16] %v2330, 128
      %2363 = vxpose.xlu0.b32.cont [8/16] %v2331, 128
      %2364 = vxpose.xlu0.b32.cont [9/16] %v2332, 128
      %2365 = vxpose.xlu0.b32.cont [10/16] %v2333, 128
      %2366 = vxpose.xlu0.b32.cont [11/16] %v2334, 128
      %2367 = vxpose.xlu0.b32.cont [12/16] %v2335, 128
      %2368 = vxpose.xlu0.b32.cont [13/16] %v2336, 128
      %2369 = vxpose.xlu0.b32.cont [14/16] %v2337, 128
      %2370 = vxpose.xlu0.b32.cont [15/16] %v2338, 128
      %2371 = vxpose.xlu0.b32.end [16/16] %v2339, 128
      %v2372 = vpop.trf.xlu0
      %v2373 = vpop.trf.xlu0
      %v2374 = vpop.trf.xlu0
      %v2375 = vpop.trf.xlu0
      %v2376 = vpop.trf.xlu0
      %v2377 = vpop.trf.xlu0
      %v2378 = vpop.trf.xlu0
      %v2379 = vpop.trf.xlu0
      %v2380 = vpop.trf.xlu0
      %v2381 = vpop.trf.xlu0
      %v2382 = vpop.trf.xlu0
      %v2383 = vpop.trf.xlu0
      %v2384 = vpop.trf.xlu0
      %v2385 = vpop.trf.xlu0
      %v2386 = vpop.trf.xlu0
      %v2387 = vpop.trf.xlu0
      %2388 = vxpose.xlu0.b32.start [1/16] %v2340, 128
      %2389 = vxpose.xlu0.b32.cont [2/16] %v2341, 128
      %2390 = vxpose.xlu0.b32.cont [3/16] %v2342, 128
      %2391 = vxpose.xlu0.b32.cont [4/16] %v2343, 128
      %2392 = vxpose.xlu0.b32.cont [5/16] %v2344, 128
      %2393 = vxpose.xlu0.b32.cont [6/16] %v2345, 128
      %2394 = vxpose.xlu0.b32.cont [7/16] %v2346, 128
      %2395 = vxpose.xlu0.b32.cont [8/16] %v2347, 128
      %2396 = vxpose.xlu0.b32.cont [9/16] %v2348, 128
      %2397 = vxpose.xlu0.b32.cont [10/16] %v2349, 128
      %2398 = vxpose.xlu0.b32.cont [11/16] %v2350, 128
      %2399 = vxpose.xlu0.b32.cont [12/16] %v2351, 128
      %2400 = vxpose.xlu0.b32.cont [13/16] %v2352, 128
      %2401 = vxpose.xlu0.b32.cont [14/16] %v2353, 128
      %2402 = vxpose.xlu0.b32.cont [15/16] %v2354, 128
      %2403 = vxpose.xlu0.b32.end [16/16] %v2355, 128
      %v2404 = vpop.trf.xlu0
      %v2405 = vpop.trf.xlu0
      %v2406 = vpop.trf.xlu0
      %v2407 = vpop.trf.xlu0
      %v2408 = vpop.trf.xlu0
      %v2409 = vpop.trf.xlu0
      %v2410 = vpop.trf.xlu0
      %v2411 = vpop.trf.xlu0
      %v2412 = vpop.trf.xlu0
      %v2413 = vpop.trf.xlu0
      %v2414 = vpop.trf.xlu0
      %v2415 = vpop.trf.xlu0
      %v2416 = vpop.trf.xlu0
      %v2417 = vpop.trf.xlu0
      %v2418 = vpop.trf.xlu0
      %v2419 = vpop.trf.xlu0
      %2420 = vst [vmem:[%s300] sm:$0xff] %v2372
      %2421 = vst [vmem:[%s300 + $0x8] sm:$0xff] %v2404
      %2422 = vst [vmem:[%s300 + $0x10] sm:$0xff] %v2373
      %2423 = vst [vmem:[%s300 + $0x18] sm:$0xff] %v2405
      %2424 = vst [vmem:[%s300 + $0x20] sm:$0xff] %v2374
      %2425 = vst [vmem:[%s300 + $0x28] sm:$0xff] %v2406
      %2426 = vst [vmem:[%s300 + $0x30] sm:$0xff] %v2375
      %2427 = vst [vmem:[%s300 + $0x38] sm:$0xff] %v2407
      %2428 = vst [vmem:[%s300 + $0x40] sm:$0xff] %v2376
      %2429 = vst [vmem:[%s300 + $0x48] sm:$0xff] %v2408
      %2430 = vst [vmem:[%s300 + $0x50] sm:$0xff] %v2377
      %2431 = vst [vmem:[%s300 + $0x58] sm:$0xff] %v2409
      %2432 = vst [vmem:[%s300 + $0x60] sm:$0xff] %v2378
      %2433 = vst [vmem:[%s300 + $0x68] sm:$0xff] %v2410
      %2434 = vst [vmem:[%s300 + $0x70] sm:$0xff] %v2379
      %2435 = vst [vmem:[%s300 + $0x78] sm:$0xff] %v2411
      %2436 = vst [vmem:[%s300 + $0x80] sm:$0xff] %v2380
      %2437 = vst [vmem:[%s300 + $0x88] sm:$0xff] %v2412
      %2438 = vst [vmem:[%s300 + $0x90] sm:$0xff] %v2381
      %2439 = vst [vmem:[%s300 + $0x98] sm:$0xff] %v2413
      %2440 = vst [vmem:[%s300 + $0xa0] sm:$0xff] %v2382
      %2441 = vst [vmem:[%s300 + $0xa8] sm:$0xff] %v2414
      %2442 = vst [vmem:[%s300 + $0xb0] sm:$0xff] %v2383
      %2443 = vst [vmem:[%s300 + $0xb8] sm:$0xff] %v2415
      %2444 = vst [vmem:[%s300 + $0xc0] sm:$0xff] %v2384
      %2445 = vst [vmem:[%s300 + $0xc8] sm:$0xff] %v2416
      %2446 = vst [vmem:[%s300 + $0xd0] sm:$0xff] %v2385
      %2447 = vst [vmem:[%s300 + $0xd8] sm:$0xff] %v2417
      %2448 = vst [vmem:[%s300 + $0xe0] sm:$0xff] %v2386
      %2449 = vst [vmem:[%s300 + $0xe8] sm:$0xff] %v2418
      %2450 = vst [vmem:[%s300 + $0xf0] sm:$0xff] %v2387
      %2451 = vst [vmem:[%s300 + $0xf8] sm:$0xff] %v2419
      %s2452 = smul.u32 2, %s23
      %p2453 = scmp.lt.s32.totalorder %s22, 1
      %s2454 = scalar_select %p2453, %s22, 1
      %p2455 = scmp.lt.s32.totalorder %s2452, 1
      %s2456 = scalar_select %p2455, %s2452, 1
      %s2457 = smul.addr %s2454, 32
      %s2458 = sadd.s32 %s2456, %s2457
      %s2459 = smul.addr %s2458, 8
      %s2460 = scalar_lea.vmem %s7, %s2459
      // Predicated region
      $region49: #{ninblock_forward.1} parent=47 // pred_check
        %p2461 = pneg %p202
      $region50: #{ninblock_forward.1} parent=47 // pred_check_branch
        %2463 = sbr.rel (%p2461) target = $region52
      $region51: #{ninblock_forward.1} parent=47 // pred_region
        %s2464 = smul.u32 2, %s23
      $region52: #{ninblock_forward.1} parent=47 // pred_fallthru
        _
    $region48: #{ninblock_forward.1} parent=5 // pred_fallthru
      _
    %p2465 = scmp.le.s32.totalorder 2, %s13
    // Predicated region
    $region53: #{ninblock_forward.1} parent=5 // pred_check
      %p2466 = pneg %p2465
    $region54: #{ninblock_forward.1} parent=5 // pred_check_branch
      %2468 = sbr.rel (%p2466) target = $region56
    $region55: #{ninblock_forward.1} parent=5 // pred_region
      %s2469 = ssub.s32 %s13, 2
      // Predicated region
      $region57: #{ninblock_forward.1} parent=55 // pred_check
        %p2470 = pneg %p208
      $region58: #{ninblock_forward.1} parent=55 // pred_check_branch
        %2472 = sbr.rel (%p2470) target = $region60
      $region59: #{ninblock_forward.1} parent=55 // pred_region
        %s2473 = smul.u32 2, %s25
        %p2474 = scmp.lt.s32.totalorder %s24, 1
        %s2475 = scalar_select %p2474, %s24, 1
        %p2476 = scmp.lt.s32.totalorder %s2473, 1
        %s2477 = scalar_select %p2476, %s2473, 1
        %s2478 = smul.addr %s2475, 32
        %s2479 = sadd.s32 %s2477, %s2478
        %s2480 = smul.addr %s2479, 8
        %s2481 = scalar_lea.vmem %s7, %s2480
      $region60: #{ninblock_forward.1} parent=55 // pred_fallthru
        _
    $region56: #{ninblock_forward.1} parent=5 // pred_fallthru
      _
  $region6: #{ninblock_forward.1} parent=0 // loop_footer
    %s17 = sadd.s32 1, %s13
  $region7: #{ninblock_forward.1} parent=0 // loop_footer_branch
    %12 = sbr.rel target = $region3
  $region8: #{ninblock_forward.1} parent=0 // loop_exit
    _

</llo_original>
